<compile_context>
chip_gen: v7x
topology: tpu7x:2x2x1
jax: 0.10.0
libtpu: 0.0.40
codegen_flags: <defaults>
</compile_context>

<pallas_src>
import numpy as np
import jax
import jax.numpy as jnp
from jax.experimental import pallas as pl
from jax.experimental.pallas import tpu as pltpu

BN_EPS = 1e-5
_VMEM_LIMIT = 32 * 1024 * 1024  # safe scoped-VMEM budget on v5e / v6e / v7x


# --------------- Kernel A: conv3x3 + bias + partial BN statistics ----------------
def _conv_stats_kernel(xp_ref, w_ref, b_ref, conv_ref, sum_ref, ssq_ref):
    # xp_ref:   (1, H+2, W+2, Cin)   zero-padded NHWC input block (one sample)
    # w_ref:    (9*Cin, Cout)        conv weight, tap-major rows (dy*3+dx, ci), HWIO order
    # b_ref:    (1, Cout)
    # conv_ref: (1, H, W, Cout)      conv + bias output
    # sum_ref / ssq_ref: (1, 1, Cout) per-sample partial sums for BatchNorm
    Hp, Wp, Cin = xp_ref.shape[1], xp_ref.shape[2], xp_ref.shape[3]
    H, W = Hp - 2, Wp - 2
    Cout = conv_ref.shape[-1]

    x = xp_ref[0]                                      # (H+2, W+2, Cin)

    # In-kernel im2col: fold the 9 taps into the contraction so the MXU sees one
    # matmul with K = 9*Cin instead of nine tiny K=Cin dots.
    cols = [x[dy:dy + H, dx:dx + W, :].reshape(H * W, Cin)
            for dy in range(3) for dx in range(3)]
    patches = jnp.concatenate(cols, axis=-1)           # (H*W, 9*Cin)

    acc = jnp.dot(patches, w_ref[...], preferred_element_type=jnp.float32)
    acc = acc + b_ref[...]                             # (H*W, Cout), conv bias

    conv_ref[...] = acc.reshape(1, H, W, Cout)
    # Partial BatchNorm statistics (global reduction finalized outside the grid).
    sum_ref[...] = jnp.sum(acc, axis=0, keepdims=True).reshape(1, 1, Cout)
    ssq_ref[...] = jnp.sum(acc * acc, axis=0, keepdims=True).reshape(1, 1, Cout)


# --------------------- Kernel B: fused BatchNorm affine + ReLU -------------------
def _bn_relu_kernel(y_ref, scale_ref, shift_ref, o_ref):
    # y_ref: (TR, Cout)   scale/shift: (1, Cout)   o_ref: (TR, Cout)
    o_ref[...] = jnp.maximum(y_ref[...] * scale_ref[...] + shift_ref[...], 0.0)


def _pick_row_tile(rows: int, cap: int = 256) -> int:
    """Largest multiple of 8 that divides `rows` (capped); falls back to full extent."""
    if rows % 8 != 0:
        return rows
    best, t = 8, 8
    while t <= min(rows, cap):
        if rows % t == 0:
            best = t
        t += 8
    return best


# ------------------------------------ Wrapper ------------------------------------
def cnn_block_forward(x_nchw, params):
    N, Cin, H, W = x_nchw.shape
    Cout = params["w"].shape[-1]

    # XLA glue on the (small) input side only: NCHW -> NHWC and zero-pad for pad=1.
    x_nhwc = jnp.transpose(x_nchw, (0, 2, 3, 1)).astype(jnp.float32)
    xp = jnp.pad(x_nhwc, ((0, 0), (1, 1), (1, 1), (0, 0)))

    w2 = params["w"].reshape(9 * Cin, Cout).astype(jnp.float32)
    b2 = params["b"].reshape(1, Cout).astype(jnp.float32)

    conv, psum, pssq = pl.pallas_call(
        _conv_stats_kernel,
        grid=(N,),
        in_specs=[
            pl.BlockSpec((1, H + 2, W + 2, Cin), lambda n: (n, 0, 0, 0)),
            pl.BlockSpec((9 * Cin, Cout), lambda n: (0, 0)),   # VMEM-resident across grid
            pl.BlockSpec((1, Cout), lambda n: (0, 0)),         # VMEM-resident across grid
        ],
        out_specs=[
            pl.BlockSpec((1, H, W, Cout), lambda n: (n, 0, 0, 0)),
            pl.BlockSpec((1, 1, Cout), lambda n: (n, 0, 0)),
            pl.BlockSpec((1, 1, Cout), lambda n: (n, 0, 0)),
        ],
        out_shape=(
            jax.ShapeDtypeStruct((N, H, W, Cout), jnp.float32),
            jax.ShapeDtypeStruct((N, 1, Cout), jnp.float32),
            jax.ShapeDtypeStruct((N, 1, Cout), jnp.float32),
        ),
        compiler_params=pltpu.CompilerParams(
            dimension_semantics=("parallel",),
            vmem_limit_bytes=_VMEM_LIMIT),
    )(xp, w2, b2)

    # BatchNorm finalize: global (N, H, W) batch statistics from the partial sums
    # (biased variance, matching nn.BatchNorm2d in training mode).
    count = float(N * H * W)
    total = jnp.sum(psum, axis=0).reshape(Cout)
    total_sq = jnp.sum(pssq, axis=0).reshape(Cout)
    mean = total / count
    var = jnp.maximum(total_sq / count - mean * mean, 0.0)
    scale = params["gamma"] * jax.lax.rsqrt(var + BN_EPS)
    shift = params["beta"] - mean * scale

    # Kernel B: fused scale/shift + ReLU over flattened rows, tiled + pipelined.
    rows = N * H * W
    tr = _pick_row_tile(rows)
    y2 = conv.reshape(rows, Cout)
    out2 = pl.pallas_call(
        _bn_relu_kernel,
        grid=(rows // tr,),
        in_specs=[
            pl.BlockSpec((tr, Cout), lambda r: (r, 0)),
            pl.BlockSpec((1, Cout), lambda r: (0, 0)),          # VMEM-resident
            pl.BlockSpec((1, Cout), lambda r: (0, 0)),          # VMEM-resident
        ],
        out_specs=pl.BlockSpec((tr, Cout), lambda r: (r, 0)),
        out_shape=jax.ShapeDtypeStruct((rows, Cout), jnp.float32),
        compiler_params=pltpu.CompilerParams(
            dimension_semantics=("parallel",),
            vmem_limit_bytes=_VMEM_LIMIT),
    )(y2, scale.reshape(1, Cout), shift.reshape(1, Cout))

    out_nhwc = out2.reshape(N, H, W, Cout)
    # Interface glue back to the PyTorch NCHW layout.
    return jnp.transpose(out_nhwc, (0, 3, 1, 2))


# ------------------------------- Pure-JAX reference ------------------------------
def cnn_block_reference(x_nchw, params):
    x_nhwc = jnp.transpose(x_nchw, (0, 2, 3, 1))
    y = jax.lax.conv_general_dilated(
        x_nhwc, params["w"], window_strides=(1, 1), padding=((1, 1), (1, 1)),
        dimension_numbers=("NHWC", "HWIO", "NHWC"))
    y = y + params["b"]
    mean = jnp.mean(y, axis=(0, 1, 2), keepdims=True)
    var = jnp.mean((y - mean) ** 2, axis=(0, 1, 2), keepdims=True)
    y = (y - mean) * jax.lax.rsqrt(var + BN_EPS) * params["gamma"] + params["beta"]
    y = jnp.maximum(y, 0.0)
    return jnp.transpose(y, (0, 3, 1, 2))


def init_params(key, in_channels: int, out_channels: int):
    # Deterministic synthetic init matching CNNBlock.__init__ shapes (weight in HWIO).
    kw, kb, kg, kbe = jax.random.split(key, 4)
    fan_in = in_channels * 9
    bound = 1.0 / np.sqrt(fan_in)
    w = jax.random.uniform(kw, (3, 3, in_channels, out_channels), jnp.float32, -bound, bound)
    b = jax.random.uniform(kb, (out_channels,), jnp.float32, -bound, bound)
    gamma = 1.0 + 0.1 * jax.random.normal(kg, (out_channels,), jnp.float32)
    beta = 0.1 * jax.random.normal(kbe, (out_channels,), jnp.float32)
    return dict(w=w, b=b, gamma=gamma, beta=beta)


# TODO(synk): BatchNorm2d's training-time running_mean/running_var buffer updates are a
# module side effect, not part of the returned activation, and are not materialized here.

if __name__ == "__main__":
    key = jax.random.PRNGKey(0)
    kx, kp = jax.random.split(key)

    N, Cin, H, W = 2, 4, 16, 16
    Cout = 8
    x = jax.random.normal(kx, (N, Cin, H, W), jnp.float32)
    params = init_params(kp, Cin, Cout)

    fwd = jax.jit(cnn_block_forward)
    out = jax.block_until_ready(fwd(x, params))
    ref = jax.block_until_ready(cnn_block_reference(x, params))

    assert out.shape == (N, Cout, H, W), out.shape
    err = float(jnp.max(jnp.abs(out - ref)))
    assert err < 2e-2, f"max abs err {err}"
    print("KERNEL_OK")
</pallas_src>

<mosaic_0001>
module attributes {stable_mosaic.version = 11 : i64} {
  func.func @_conv_stats_kernel(%arg0: i32, %arg1: memref<1x18x18x4xf32, #tpu.memory_space<vmem>>, %arg2: memref<36x8xf32, #tpu.memory_space<vmem>>, %arg3: memref<1x8xf32, #tpu.memory_space<vmem>>, %arg4: memref<1x16x16x8xf32, #tpu.memory_space<vmem>>, %arg5: memref<1x1x8xf32, #tpu.memory_space<vmem>>, %arg6: memref<1x1x8xf32, #tpu.memory_space<vmem>>) attributes {dimension_semantics = [#tpu.dimension_semantics<parallel>], iteration_bounds = array<i64: 2>, scalar_prefetch = 0 : i64, scratch_operands = 0 : i64, tpu.core_type = #tpu.core_type<tc>, window_params = [{transform_indices = @transform_0, window_bounds = array<i64: 1, 18, 18, 4>}, {pipeline_mode = #tpu.pipeline_mode<synchronous>, transform_indices = @transform_1, window_bounds = array<i64: 36, 8>}, {pipeline_mode = #tpu.pipeline_mode<synchronous>, transform_indices = @transform_2, window_bounds = array<i64: 1, 8>}, {transform_indices = @transform_3, window_bounds = array<i64: 1, 16, 16, 8>}, {transform_indices = @transform_4, window_bounds = array<i64: 1, 1, 8>}, {transform_indices = @transform_5, window_bounds = array<i64: 1, 1, 8>}]} {
    %c0 = arith.constant 0 : index
    %c0_0 = arith.constant 0 : index
    %c0_1 = arith.constant 0 : index
    %c0_2 = arith.constant 0 : index
    %0 = vector.load %arg1[%c0, %c0_0, %c0_1, %c0_2] : memref<1x18x18x4xf32, #tpu.memory_space<vmem>>, vector<1x18x18x4xf32>
    %1 = vector.shape_cast %0 : vector<1x18x18x4xf32> to vector<18x18x4xf32>
    %2 = vector.extract_strided_slice %1 {offsets = [0, 0, 0], sizes = [16, 16, 4], strides = [1, 1, 1]} : vector<18x18x4xf32> to vector<16x16x4xf32>
    %3 = vector.shape_cast %2 : vector<16x16x4xf32> to vector<256x4xf32>
    %4 = vector.extract_strided_slice %1 {offsets = [0, 1, 0], sizes = [16, 16, 4], strides = [1, 1, 1]} : vector<18x18x4xf32> to vector<16x16x4xf32>
    %5 = vector.shape_cast %4 : vector<16x16x4xf32> to vector<256x4xf32>
    %6 = vector.extract_strided_slice %1 {offsets = [0, 2, 0], sizes = [16, 16, 4], strides = [1, 1, 1]} : vector<18x18x4xf32> to vector<16x16x4xf32>
    %7 = vector.shape_cast %6 : vector<16x16x4xf32> to vector<256x4xf32>
    %8 = vector.extract_strided_slice %1 {offsets = [1, 0, 0], sizes = [16, 16, 4], strides = [1, 1, 1]} : vector<18x18x4xf32> to vector<16x16x4xf32>
    %9 = vector.shape_cast %8 : vector<16x16x4xf32> to vector<256x4xf32>
    %10 = vector.extract_strided_slice %1 {offsets = [1, 1, 0], sizes = [16, 16, 4], strides = [1, 1, 1]} : vector<18x18x4xf32> to vector<16x16x4xf32>
    %11 = vector.shape_cast %10 : vector<16x16x4xf32> to vector<256x4xf32>
    %12 = vector.extract_strided_slice %1 {offsets = [1, 2, 0], sizes = [16, 16, 4], strides = [1, 1, 1]} : vector<18x18x4xf32> to vector<16x16x4xf32>
    %13 = vector.shape_cast %12 : vector<16x16x4xf32> to vector<256x4xf32>
    %14 = vector.extract_strided_slice %1 {offsets = [2, 0, 0], sizes = [16, 16, 4], strides = [1, 1, 1]} : vector<18x18x4xf32> to vector<16x16x4xf32>
    %15 = vector.shape_cast %14 : vector<16x16x4xf32> to vector<256x4xf32>
    %16 = vector.extract_strided_slice %1 {offsets = [2, 1, 0], sizes = [16, 16, 4], strides = [1, 1, 1]} : vector<18x18x4xf32> to vector<16x16x4xf32>
    %17 = vector.shape_cast %16 : vector<16x16x4xf32> to vector<256x4xf32>
    %18 = vector.extract_strided_slice %1 {offsets = [2, 2, 0], sizes = [16, 16, 4], strides = [1, 1, 1]} : vector<18x18x4xf32> to vector<16x16x4xf32>
    %19 = vector.shape_cast %18 : vector<16x16x4xf32> to vector<256x4xf32>
    %20 = tpu.concatenate %3, %5, %7, %9, %11, %13, %15, %17, %19 in 1 : vector<256x4xf32>, vector<256x4xf32>, vector<256x4xf32>, vector<256x4xf32>, vector<256x4xf32>, vector<256x4xf32>, vector<256x4xf32>, vector<256x4xf32>, vector<256x4xf32> -> vector<256x36xf32>
    %c0_3 = arith.constant 0 : index
    %c0_4 = arith.constant 0 : index
    %21 = vector.load %arg2[%c0_3, %c0_4] : memref<36x8xf32, #tpu.memory_space<vmem>>, vector<36x8xf32>
    %cst = arith.constant dense<0.000000e+00> : vector<256x8xf32>
    %22 = tpu.matmul %20, %21, %cst {dimension_numbers = #tpu.dot_dimension_numbers<[1], [0], [0], [1], [0, 0, 1, 1], [], []>} : vector<256x36xf32>, vector<36x8xf32>, vector<256x8xf32> -> vector<256x8xf32>
    %c0_5 = arith.constant 0 : index
    %c0_6 = arith.constant 0 : index
    %23 = vector.load %arg3[%c0_5, %c0_6] : memref<1x8xf32, #tpu.memory_space<vmem>>, vector<1x8xf32>
    %24 = vector.broadcast %23 : vector<1x8xf32> to vector<256x8xf32>
    %25 = arith.addf %22, %24 : vector<256x8xf32>
    %26 = vector.shape_cast %25 : vector<256x8xf32> to vector<1x16x16x8xf32>
    %c0_7 = arith.constant 0 : index
    %c0_8 = arith.constant 0 : index
    %c0_9 = arith.constant 0 : index
    %c0_10 = arith.constant 0 : index
    %27 = vector.load %arg4[%c0_7, %c0_8, %c0_9, %c0_10] : memref<1x16x16x8xf32, #tpu.memory_space<vmem>>, vector<1x16x16x8xf32>
    tpu.vector_store %arg4[%c0_7, %c0_8, %c0_9, %c0_10], %26 {strides = array<i32>} : memref<1x16x16x8xf32, #tpu.memory_space<vmem>>, vector<1x16x16x8xf32>,
    %cst_11 = arith.constant dense<0.000000e+00> : vector<8xf32>
    %28 = vector.multi_reduction <add>, %25, %cst_11 [0] : vector<256x8xf32> to vector<8xf32>
    %29 = vector.shape_cast %28 : vector<8xf32> to vector<1x8xf32>
    %30 = vector.shape_cast %29 : vector<1x8xf32> to vector<1x1x8xf32>
    %c0_12 = arith.constant 0 : index
    %c0_13 = arith.constant 0 : index
    %c0_14 = arith.constant 0 : index
    %31 = vector.load %arg5[%c0_12, %c0_13, %c0_14] : memref<1x1x8xf32, #tpu.memory_space<vmem>>, vector<1x1x8xf32>
    tpu.vector_store %arg5[%c0_12, %c0_13, %c0_14], %30 {strides = array<i32>} : memref<1x1x8xf32, #tpu.memory_space<vmem>>, vector<1x1x8xf32>,
    %32 = arith.mulf %25, %25 : vector<256x8xf32>
    %cst_15 = arith.constant dense<0.000000e+00> : vector<8xf32>
    %33 = vector.multi_reduction <add>, %32, %cst_15 [0] : vector<256x8xf32> to vector<8xf32>
    %34 = vector.shape_cast %33 : vector<8xf32> to vector<1x8xf32>
    %35 = vector.shape_cast %34 : vector<1x8xf32> to vector<1x1x8xf32>
    %c0_16 = arith.constant 0 : index
    %c0_17 = arith.constant 0 : index
    %c0_18 = arith.constant 0 : index
    %36 = vector.load %arg6[%c0_16, %c0_17, %c0_18] : memref<1x1x8xf32, #tpu.memory_space<vmem>>, vector<1x1x8xf32>
    tpu.vector_store %arg6[%c0_16, %c0_17, %c0_18], %35 {strides = array<i32>} : memref<1x1x8xf32, #tpu.memory_space<vmem>>, vector<1x1x8xf32>,
    return
  }
  func.func @transform_0(%arg0: i32) -> (i32, i32, i32, i32) {
    %c0_i32 = arith.constant 0 : i32
    %c0_i32_0 = arith.constant 0 : i32
    %c0_i32_1 = arith.constant 0 : i32
    %c0_i32_2 = arith.constant 0 : i32
    return %arg0, %c0_i32, %c0_i32_0, %c0_i32_1 : i32, i32, i32, i32
  }
  func.func @transform_1(%arg0: i32) -> (i32, i32) {
    %c0_i32 = arith.constant 0 : i32
    %c0_i32_0 = arith.constant 0 : i32
    %c0_i32_1 = arith.constant 0 : i32
    return %c0_i32, %c0_i32_0 : i32, i32
  }
  func.func @transform_2(%arg0: i32) -> (i32, i32) {
    %c0_i32 = arith.constant 0 : i32
    %c0_i32_0 = arith.constant 0 : i32
    %c0_i32_1 = arith.constant 0 : i32
    return %c0_i32, %c0_i32_0 : i32, i32
  }
  func.func @transform_3(%arg0: i32) -> (i32, i32, i32, i32) {
    %c0_i32 = arith.constant 0 : i32
    %c0_i32_0 = arith.constant 0 : i32
    %c0_i32_1 = arith.constant 0 : i32
    %c0_i32_2 = arith.constant 0 : i32
    return %arg0, %c0_i32, %c0_i32_0, %c0_i32_1 : i32, i32, i32, i32
  }
  func.func @transform_4(%arg0: i32) -> (i32, i32, i32) {
    %c0_i32 = arith.constant 0 : i32
    %c0_i32_0 = arith.constant 0 : i32
    %c0_i32_1 = arith.constant 0 : i32
    return %arg0, %c0_i32, %c0_i32_0 : i32, i32, i32
  }
  func.func @transform_5(%arg0: i32) -> (i32, i32, i32) {
    %c0_i32 = arith.constant 0 : i32
    %c0_i32_0 = arith.constant 0 : i32
    %c0_i32_1 = arith.constant 0 : i32
    return %arg0, %c0_i32, %c0_i32_0 : i32, i32, i32
  }
}

module attributes {stable_mosaic.version = 11 : i64} {
  func.func @_bn_relu_kernel(%arg0: i32, %arg1: memref<256x8xf32, #tpu.memory_space<vmem>>, %arg2: memref<1x8xf32, #tpu.memory_space<vmem>>, %arg3: memref<1x8xf32, #tpu.memory_space<vmem>>, %arg4: memref<256x8xf32, #tpu.memory_space<vmem>>) attributes {dimension_semantics = [#tpu.dimension_semantics<parallel>], iteration_bounds = array<i64: 2>, scalar_prefetch = 0 : i64, scratch_operands = 0 : i64, tpu.core_type = #tpu.core_type<tc>, window_params = [{transform_indices = @transform_0, window_bounds = array<i64: 256, 8>}, {pipeline_mode = #tpu.pipeline_mode<synchronous>, transform_indices = @transform_1, window_bounds = array<i64: 1, 8>}, {pipeline_mode = #tpu.pipeline_mode<synchronous>, transform_indices = @transform_2, window_bounds = array<i64: 1, 8>}, {transform_indices = @transform_3, window_bounds = array<i64: 256, 8>}]} {
    %c0 = arith.constant 0 : index
    %c0_0 = arith.constant 0 : index
    %0 = vector.load %arg1[%c0, %c0_0] : memref<256x8xf32, #tpu.memory_space<vmem>>, vector<256x8xf32>
    %c0_1 = arith.constant 0 : index
    %c0_2 = arith.constant 0 : index
    %1 = vector.load %arg2[%c0_1, %c0_2] : memref<1x8xf32, #tpu.memory_space<vmem>>, vector<1x8xf32>
    %2 = vector.broadcast %1 : vector<1x8xf32> to vector<256x8xf32>
    %3 = arith.mulf %0, %2 : vector<256x8xf32>
    %c0_3 = arith.constant 0 : index
    %c0_4 = arith.constant 0 : index
    %4 = vector.load %arg3[%c0_3, %c0_4] : memref<1x8xf32, #tpu.memory_space<vmem>>, vector<1x8xf32>
    %5 = vector.broadcast %4 : vector<1x8xf32> to vector<256x8xf32>
    %6 = arith.addf %3, %5 : vector<256x8xf32>
    %cst = arith.constant 0.000000e+00 : f32
    %7 = vector.broadcast %cst : f32 to vector<256x8xf32>
    %8 = arith.maximumf %6, %7 : vector<256x8xf32>
    %c0_5 = arith.constant 0 : index
    %c0_6 = arith.constant 0 : index
    %9 = vector.load %arg4[%c0_5, %c0_6] : memref<256x8xf32, #tpu.memory_space<vmem>>, vector<256x8xf32>
    tpu.vector_store %arg4[%c0_5, %c0_6], %8 {strides = array<i32>} : memref<256x8xf32, #tpu.memory_space<vmem>>, vector<256x8xf32>,
    return
  }
  func.func @transform_0(%arg0: i32) -> (i32, i32) {
    %c0_i32 = arith.constant 0 : i32
    %c0_i32_0 = arith.constant 0 : i32
    return %arg0, %c0_i32 : i32, i32
  }
  func.func @transform_1(%arg0: i32) -> (i32, i32) {
    %c0_i32 = arith.constant 0 : i32
    %c0_i32_0 = arith.constant 0 : i32
    %c0_i32_1 = arith.constant 0 : i32
    return %c0_i32, %c0_i32_0 : i32, i32
  }
  func.func @transform_2(%arg0: i32) -> (i32, i32) {
    %c0_i32 = arith.constant 0 : i32
    %c0_i32_0 = arith.constant 0 : i32
    %c0_i32_1 = arith.constant 0 : i32
    return %c0_i32, %c0_i32_0 : i32, i32
  }
  func.func @transform_3(%arg0: i32) -> (i32, i32) {
    %c0_i32 = arith.constant 0 : i32
    %c0_i32_0 = arith.constant 0 : i32
    return %arg0, %c0_i32 : i32, i32
  }
}

</mosaic_0001>

<llo_original>
// kernel: cnn_block_forward.3
$region0: #{cnn_block_forward.3}
  #allocation0 [shape = 'u32[]', space=smem, size = 0x4, offset = 0x4, fixed_abs, tag = 'smem constant byte address 0x4 - core index']
  #allocation1 [shape = 'u32[144,128]{1,0:T(1,128)}', space=vmem, size = 0x12000, scoped, tag = 'internal scratch']
  %s0 = inlined_call_operand.vmem [shape: f32[512,8], index: 0, kind: input, shape index: {}]
  %s1 = inlined_call_operand.vmem [shape: f32[1,8], index: 1, kind: input, shape index: {}]
  %s2 = inlined_call_operand.vmem [shape: f32[1,8], index: 2, kind: input, shape index: {}]
  %s3 = inlined_call_operand.vmem [shape: f32[512,8], index: 3, kind: output, shape index: {}]
  %s4 = sld [smem:[#allocation0]]
  $region45: #{cnn_block_forward.3} parent=0
    _
  %s6 = ssub.s32 1, %s4
  %s7 = scalar_select 0, %s6, %s4
  loop: start=0, step=1, limit=4
  $region2: #{cnn_block_forward.3} parent=0 // loop_pre_header
    _
  $region3: #{cnn_block_forward.3} parent=0 // loop_header
    %s9 = sphi 0, %s13
    %p10 = scmp.ge.s32.totalorder %s9, 4
    %s19 = sphi 0, %s21
    %s22 = sphi 0, %s19
    %s23 = sphi 0, %s22
    %s39 = sphi 0, %s23
    %s43 = sphi 0, %s43
    %s45 = sphi 0, %s43
    %s46 = sphi 0, %s45
    %s60 = sphi 0, %s46
    %s64 = sphi 0, %s64
    %s66 = sphi 0, %s64
    %s67 = sphi 0, %s66
    %s81 = sphi 0, %s67
    %s87 = sphi 0, %s89
    %s90 = sphi 0, %s87
    %s91 = sphi 0, %s90
    %s107 = sphi 0, %s91
  $region4: #{cnn_block_forward.3} parent=0 // loop_header_branch
    %12 = sbr.rel (%p10) target = $region8
  $region5: #{cnn_block_forward.3} parent=0 // loop_body
    %s14 = ssub.s32 %s9, 1
    %s15 = ssub.s32 %s9, 2
    %s16 = sadd.s32 %s9, 1
    %s17 = ssub.s32 %s9, %s16
    %p18 = scmp.eq.s32.totalorder %s17, 0
    %s20 = sadd.s32 %s19, 1
    %s21 = scalar_select %p18, %s19, %s20
    %p24 = pneg %p18
    %p25 = scmp.eq.s32.totalorder %s9, 1
    %p26 = por %p24, %p25
    %p27 = scmp.ne.s32.totalorder %s19, %s22
    %p28 = scmp.eq.s32.totalorder %s9, 0
    %p29 = por %p27, %p28
    %p30 = scmp.ne.s32.totalorder %s19, %s22
    %p31 = scmp.eq.s32.totalorder %s14, 1
    %p32 = por %p30, %p31
    %p33 = scmp.ne.s32.totalorder %s22, %s23
    %p34 = scmp.eq.s32.totalorder %s14, 0
    %p35 = por %p33, %p34
    %p36 = scmp.ne.s32.totalorder %s22, %s23
    %p37 = scmp.eq.s32.totalorder %s15, 1
    %p38 = por %p36, %p37
    %p40 = scmp.ne.s32.totalorder %s23, %s39
    %p41 = scmp.eq.s32.totalorder %s15, 0
    %p42 = por %p40, %p41
    %s44 = sadd.s32 %s43, 1
    %p47 = scmp.eq.s32.totalorder %s9, 1
    %p48 = scmp.ne.s32.totalorder %s43, %s45
    %p49 = scmp.eq.s32.totalorder %s9, 0
    %p50 = por %p48, %p49
    %p51 = scmp.ne.s32.totalorder %s43, %s45
    %p52 = scmp.eq.s32.totalorder %s14, 1
    %p53 = por %p51, %p52
    %p54 = scmp.ne.s32.totalorder %s45, %s46
    %p55 = scmp.eq.s32.totalorder %s14, 0
    %p56 = por %p54, %p55
    %p57 = scmp.ne.s32.totalorder %s45, %s46
    %p58 = scmp.eq.s32.totalorder %s15, 1
    %p59 = por %p57, %p58
    %p61 = scmp.ne.s32.totalorder %s46, %s60
    %p62 = scmp.eq.s32.totalorder %s15, 0
    %p63 = por %p61, %p62
    %s65 = sadd.s32 %s64, 1
    %p68 = scmp.eq.s32.totalorder %s9, 1
    %p69 = scmp.ne.s32.totalorder %s64, %s66
    %p70 = scmp.eq.s32.totalorder %s9, 0
    %p71 = por %p69, %p70
    %p72 = scmp.ne.s32.totalorder %s64, %s66
    %p73 = scmp.eq.s32.totalorder %s14, 1
    %p74 = por %p72, %p73
    %p75 = scmp.ne.s32.totalorder %s66, %s67
    %p76 = scmp.eq.s32.totalorder %s14, 0
    %p77 = por %p75, %p76
    %p78 = scmp.ne.s32.totalorder %s66, %s67
    %p79 = scmp.eq.s32.totalorder %s15, 1
    %p80 = por %p78, %p79
    %p82 = scmp.ne.s32.totalorder %s67, %s81
    %p83 = scmp.eq.s32.totalorder %s15, 0
    %p84 = por %p82, %p83
    %s85 = ssub.s32 %s9, %s16
    %p86 = scmp.eq.s32.totalorder %s85, 0
    %s88 = sadd.s32 %s87, 1
    %s89 = scalar_select %p86, %s87, %s88
    %p92 = pneg %p86
    %p93 = scmp.eq.s32.totalorder %s9, 1
    %p94 = por %p92, %p93
    %p95 = scmp.ne.s32.totalorder %s87, %s90
    %p96 = scmp.eq.s32.totalorder %s9, 0
    %p97 = por %p95, %p96
    %p98 = scmp.ne.s32.totalorder %s87, %s90
    %p99 = scmp.eq.s32.totalorder %s14, 1
    %p100 = por %p98, %p99
    %p101 = scmp.ne.s32.totalorder %s90, %s91
    %p102 = scmp.eq.s32.totalorder %s14, 0
    %p103 = por %p101, %p102
    %p104 = scmp.ne.s32.totalorder %s90, %s91
    %p105 = scmp.eq.s32.totalorder %s15, 1
    %p106 = por %p104, %p105
    %p108 = scmp.ne.s32.totalorder %s91, %s107
    %p109 = scmp.eq.s32.totalorder %s15, 0
    %p110 = por %p108, %p109
    %p111 = scmp.le.s32.totalorder 1, %s9
    %p112 = scmp.lt.s32.totalorder %s9, 3
    %p113 = pnand %p111, %p112
    %p114 = pneg %p113
    // Predicated region
    $region9: #{cnn_block_forward.3} parent=5 // pred_check
      _
    $region10: #{cnn_block_forward.3} parent=5 // pred_check_branch
      %116 = sbr.rel (%p113) target = $region12
    $region11: #{cnn_block_forward.3} parent=5 // pred_region
      %s117 = ssub.s32 %s9, 1
      // Predicated region
      $region13: #{cnn_block_forward.3} parent=11 // pred_check
        %p118 = pneg %p56
      $region14: #{cnn_block_forward.3} parent=11 // pred_check_branch
        %120 = sbr.rel (%p118) target = $region16
      $region15: #{cnn_block_forward.3} parent=11 // pred_region
        _
      $region16: #{cnn_block_forward.3} parent=11 // pred_fallthru
        _
      // Predicated region
      $region17: #{cnn_block_forward.3} parent=11 // pred_check
        %p121 = pneg %p77
      $region18: #{cnn_block_forward.3} parent=11 // pred_check_branch
        %123 = sbr.rel (%p121) target = $region20
      $region19: #{cnn_block_forward.3} parent=11 // pred_region
        _
      $region20: #{cnn_block_forward.3} parent=11 // pred_fallthru
        _
    $region12: #{cnn_block_forward.3} parent=5 // pred_fallthru
      _
    %p124 = scmp.lt.s32.totalorder %s9, 2
    // Predicated region
    $region21: #{cnn_block_forward.3} parent=5 // pred_check
      %p125 = pneg %p124
    $region22: #{cnn_block_forward.3} parent=5 // pred_check_branch
      %127 = sbr.rel (%p125) target = $region24
    $region23: #{cnn_block_forward.3} parent=5 // pred_region
      // Predicated region
      $region25: #{cnn_block_forward.3} parent=23 // pred_check
        %p128 = pneg %p29
      $region26: #{cnn_block_forward.3} parent=23 // pred_check_branch
        %130 = sbr.rel (%p128) target = $region28
      $region27: #{cnn_block_forward.3} parent=23 // pred_region
        %s131 = smul.u32 32, %s9
        %p132 = scmp.lt.s32.totalorder %s131, 63
        %s133 = scalar_select %p132, %s131, 63
        %s134 = smul.addr %s133, 8
        %s135 = scalar_lea.vmem %s0, %s134
        %s136 = smul.u32 32, %s9
      $region28: #{cnn_block_forward.3} parent=23 // pred_fallthru
        _
    $region24: #{cnn_block_forward.3} parent=5 // pred_fallthru
      _
    %p137 = scmp.le.s32.totalorder 1, %s9
    %p138 = scmp.lt.s32.totalorder %s9, 3
    %p139 = pnand %p137, %p138
    %p140 = pneg %p139
    // Predicated region
    $region29: #{cnn_block_forward.3} parent=5 // pred_check
      _
    $region30: #{cnn_block_forward.3} parent=5 // pred_check_branch
      %142 = sbr.rel (%p139) target = $region32
    $region31: #{cnn_block_forward.3} parent=5 // pred_region
      %s143 = ssub.s32 %s9, 1
      %s144 = smul.u32 32, %s14
      %p145 = scmp.lt.s32.totalorder %s144, 63
      %s146 = scalar_select %p145, %s144, 63
      %s147 = smul.addr %s146, 8
      %s148 = scalar_lea.vmem %s0, %s147
      %p149 = pneg %p35
      %p150 = pneg %p32
      %p151 = pneg %p56
      %p152 = pneg %p53
      %p153 = pneg %p77
      %p154 = pneg %p74
      %p155 = pneg %p103
      %p156 = pneg %p100
      %s157 = smul.u32 32, %s14
      %p158 = scmp.lt.s32.totalorder %s157, 63
      %s159 = scalar_select %p158, %s157, 63
      %s160 = smul.addr %s159, 8
      %s161 = scalar_lea.vmem %s3, %s160
      %s162 = smul.u32 32, %s14
      %p163 = scmp.lt.s32.totalorder %s162, 63
      %s164 = scalar_select %p163, %s162, 63
      %s165 = smul.addr %s164, 8
      %s166 = scalar_lea.vmem %s0, %s165
      %s167 = smul.u32 32, %s14
      %s168 = smul.u32 32, %s14
      %p169 = scmp.lt.s32.totalorder %s168, 63
      %s170 = scalar_select %p169, %s168, 63
      %s171 = smul.addr %s170, 8
      %s172 = scalar_lea.vmem %s3, %s171
      %s173 = smul.u32 32, %s14
      %v174 = vld [vmem:[%s166] sm:$0xff]
      %v175 = vld [vmem:[%s166 + $0x8] sm:$0xff]
      %v176 = vld [vmem:[%s166 + $0x10] sm:$0xff]
      %v177 = vld [vmem:[%s166 + $0x18] sm:$0xff]
      %v178 = vld [vmem:[%s166 + $0x20] sm:$0xff]
      %v179 = vld [vmem:[%s166 + $0x28] sm:$0xff]
      %v180 = vld [vmem:[%s166 + $0x30] sm:$0xff]
      %v181 = vld [vmem:[%s166 + $0x38] sm:$0xff]
      %v182 = vld [vmem:[%s166 + $0x40] sm:$0xff]
      %v183 = vld [vmem:[%s166 + $0x48] sm:$0xff]
      %v184 = vld [vmem:[%s166 + $0x50] sm:$0xff]
      %v185 = vld [vmem:[%s166 + $0x58] sm:$0xff]
      %v186 = vld [vmem:[%s166 + $0x60] sm:$0xff]
      %v187 = vld [vmem:[%s166 + $0x68] sm:$0xff]
      %v188 = vld [vmem:[%s166 + $0x70] sm:$0xff]
      %v189 = vld [vmem:[%s166 + $0x78] sm:$0xff]
      %v190 = vld [vmem:[%s166 + $0x80] sm:$0xff]
      %v191 = vld [vmem:[%s166 + $0x88] sm:$0xff]
      %v192 = vld [vmem:[%s166 + $0x90] sm:$0xff]
      %v193 = vld [vmem:[%s166 + $0x98] sm:$0xff]
      %v194 = vld [vmem:[%s166 + $0xa0] sm:$0xff]
      %v195 = vld [vmem:[%s166 + $0xa8] sm:$0xff]
      %v196 = vld [vmem:[%s166 + $0xb0] sm:$0xff]
      %v197 = vld [vmem:[%s166 + $0xb8] sm:$0xff]
      %v198 = vld [vmem:[%s166 + $0xc0] sm:$0xff]
      %v199 = vld [vmem:[%s166 + $0xc8] sm:$0xff]
      %v200 = vld [vmem:[%s166 + $0xd0] sm:$0xff]
      %v201 = vld [vmem:[%s166 + $0xd8] sm:$0xff]
      %v202 = vld [vmem:[%s166 + $0xe0] sm:$0xff]
      %v203 = vld [vmem:[%s166 + $0xe8] sm:$0xff]
      %v204 = vld [vmem:[%s166 + $0xf0] sm:$0xff]
      %v205 = vld [vmem:[%s166 + $0xf8] sm:$0xff]
      %v206 = vld [vmem:[%s1] sm:$0x1]
      %v208 = vlaneseq
      %v209 = vshrl.u32 %v208, 7
      %v210 = vsub.s32 0, %v209
      %v211 = vrot.slane %v206, %v210
      %v213 = vmul.f32 %v174, %v211
      %v214 = vmul.f32 %v175, %v211
      %v215 = vmul.f32 %v176, %v211
      %v216 = vmul.f32 %v177, %v211
      %v217 = vmul.f32 %v178, %v211
      %v218 = vmul.f32 %v179, %v211
      %v219 = vmul.f32 %v180, %v211
      %v220 = vmul.f32 %v181, %v211
      %v221 = vmul.f32 %v182, %v211
      %v222 = vmul.f32 %v183, %v211
      %v223 = vmul.f32 %v184, %v211
      %v224 = vmul.f32 %v185, %v211
      %v225 = vmul.f32 %v186, %v211
      %v226 = vmul.f32 %v187, %v211
      %v227 = vmul.f32 %v188, %v211
      %v228 = vmul.f32 %v189, %v211
      %v229 = vmul.f32 %v190, %v211
      %v230 = vmul.f32 %v191, %v211
      %v231 = vmul.f32 %v192, %v211
      %v232 = vmul.f32 %v193, %v211
      %v233 = vmul.f32 %v194, %v211
      %v234 = vmul.f32 %v195, %v211
      %v235 = vmul.f32 %v196, %v211
      %v236 = vmul.f32 %v197, %v211
      %v237 = vmul.f32 %v198, %v211
      %v238 = vmul.f32 %v199, %v211
      %v239 = vmul.f32 %v200, %v211
      %v240 = vmul.f32 %v201, %v211
      %v241 = vmul.f32 %v202, %v211
      %v242 = vmul.f32 %v203, %v211
      %v243 = vmul.f32 %v204, %v211
      %v244 = vmul.f32 %v205, %v211
      %v245 = vld [vmem:[%s2] sm:$0x1]
      %v247 = vlaneseq
      %v248 = vshrl.u32 %v247, 7
      %v249 = vsub.s32 0, %v248
      %v250 = vrot.slane %v245, %v249
      %v252 = vadd.f32 %v213, %v250
      %v253 = vadd.f32 %v214, %v250
      %v254 = vadd.f32 %v215, %v250
      %v255 = vadd.f32 %v216, %v250
      %v256 = vadd.f32 %v217, %v250
      %v257 = vadd.f32 %v218, %v250
      %v258 = vadd.f32 %v219, %v250
      %v259 = vadd.f32 %v220, %v250
      %v260 = vadd.f32 %v221, %v250
      %v261 = vadd.f32 %v222, %v250
      %v262 = vadd.f32 %v223, %v250
      %v263 = vadd.f32 %v224, %v250
      %v264 = vadd.f32 %v225, %v250
      %v265 = vadd.f32 %v226, %v250
      %v266 = vadd.f32 %v227, %v250
      %v267 = vadd.f32 %v228, %v250
      %v268 = vadd.f32 %v229, %v250
      %v269 = vadd.f32 %v230, %v250
      %v270 = vadd.f32 %v231, %v250
      %v271 = vadd.f32 %v232, %v250
      %v272 = vadd.f32 %v233, %v250
      %v273 = vadd.f32 %v234, %v250
      %v274 = vadd.f32 %v235, %v250
      %v275 = vadd.f32 %v236, %v250
      %v276 = vadd.f32 %v237, %v250
      %v277 = vadd.f32 %v238, %v250
      %v278 = vadd.f32 %v239, %v250
      %v279 = vadd.f32 %v240, %v250
      %v280 = vadd.f32 %v241, %v250
      %v281 = vadd.f32 %v242, %v250
      %v282 = vadd.f32 %v243, %v250
      %v283 = vadd.f32 %v244, %v250
      %v284 = vmax.f32 %v252, 0.0
      %v285 = vmax.f32 %v253, 0.0
      %v286 = vmax.f32 %v254, 0.0
      %v287 = vmax.f32 %v255, 0.0
      %v288 = vmax.f32 %v256, 0.0
      %v289 = vmax.f32 %v257, 0.0
      %v290 = vmax.f32 %v258, 0.0
      %v291 = vmax.f32 %v259, 0.0
      %v292 = vmax.f32 %v260, 0.0
      %v293 = vmax.f32 %v261, 0.0
      %v294 = vmax.f32 %v262, 0.0
      %v295 = vmax.f32 %v263, 0.0
      %v296 = vmax.f32 %v264, 0.0
      %v297 = vmax.f32 %v265, 0.0
      %v298 = vmax.f32 %v266, 0.0
      %v299 = vmax.f32 %v267, 0.0
      %v300 = vmax.f32 %v268, 0.0
      %v301 = vmax.f32 %v269, 0.0
      %v302 = vmax.f32 %v270, 0.0
      %v303 = vmax.f32 %v271, 0.0
      %v304 = vmax.f32 %v272, 0.0
      %v305 = vmax.f32 %v273, 0.0
      %v306 = vmax.f32 %v274, 0.0
      %v307 = vmax.f32 %v275, 0.0
      %v308 = vmax.f32 %v276, 0.0
      %v309 = vmax.f32 %v277, 0.0
      %v310 = vmax.f32 %v278, 0.0
      %v311 = vmax.f32 %v279, 0.0
      %v312 = vmax.f32 %v280, 0.0
      %v313 = vmax.f32 %v281, 0.0
      %v314 = vmax.f32 %v282, 0.0
      %v315 = vmax.f32 %v283, 0.0
      %vm316 = vcmask 64512
      %317 = vst.msk [vmem:[%s172] sm:$0xff] %vm316, %v284
      %318 = vst.msk [vmem:[%s172 + $0x8] sm:$0xff] %vm316, %v285
      %319 = vst.msk [vmem:[%s172 + $0x10] sm:$0xff] %vm316, %v286
      %320 = vst.msk [vmem:[%s172 + $0x18] sm:$0xff] %vm316, %v287
      %321 = vst.msk [vmem:[%s172 + $0x20] sm:$0xff] %vm316, %v288
      %322 = vst.msk [vmem:[%s172 + $0x28] sm:$0xff] %vm316, %v289
      %323 = vst.msk [vmem:[%s172 + $0x30] sm:$0xff] %vm316, %v290
      %324 = vst.msk [vmem:[%s172 + $0x38] sm:$0xff] %vm316, %v291
      %325 = vst.msk [vmem:[%s172 + $0x40] sm:$0xff] %vm316, %v292
      %326 = vst.msk [vmem:[%s172 + $0x48] sm:$0xff] %vm316, %v293
      %327 = vst.msk [vmem:[%s172 + $0x50] sm:$0xff] %vm316, %v294
      %328 = vst.msk [vmem:[%s172 + $0x58] sm:$0xff] %vm316, %v295
      %329 = vst.msk [vmem:[%s172 + $0x60] sm:$0xff] %vm316, %v296
      %330 = vst.msk [vmem:[%s172 + $0x68] sm:$0xff] %vm316, %v297
      %331 = vst.msk [vmem:[%s172 + $0x70] sm:$0xff] %vm316, %v298
      %332 = vst.msk [vmem:[%s172 + $0x78] sm:$0xff] %vm316, %v299
      %333 = vst.msk [vmem:[%s172 + $0x80] sm:$0xff] %vm316, %v300
      %334 = vst.msk [vmem:[%s172 + $0x88] sm:$0xff] %vm316, %v301
      %335 = vst.msk [vmem:[%s172 + $0x90] sm:$0xff] %vm316, %v302
      %336 = vst.msk [vmem:[%s172 + $0x98] sm:$0xff] %vm316, %v303
      %337 = vst.msk [vmem:[%s172 + $0xa0] sm:$0xff] %vm316, %v304
      %338 = vst.msk [vmem:[%s172 + $0xa8] sm:$0xff] %vm316, %v305
      %339 = vst.msk [vmem:[%s172 + $0xb0] sm:$0xff] %vm316, %v306
      %340 = vst.msk [vmem:[%s172 + $0xb8] sm:$0xff] %vm316, %v307
      %341 = vst.msk [vmem:[%s172 + $0xc0] sm:$0xff] %vm316, %v308
      %342 = vst.msk [vmem:[%s172 + $0xc8] sm:$0xff] %vm316, %v309
      %343 = vst.msk [vmem:[%s172 + $0xd0] sm:$0xff] %vm316, %v310
      %344 = vst.msk [vmem:[%s172 + $0xd8] sm:$0xff] %vm316, %v311
      %345 = vst.msk [vmem:[%s172 + $0xe0] sm:$0xff] %vm316, %v312
      %346 = vst.msk [vmem:[%s172 + $0xe8] sm:$0xff] %vm316, %v313
      %347 = vst.msk [vmem:[%s172 + $0xf0] sm:$0xff] %vm316, %v314
      %348 = vst.msk [vmem:[%s172 + $0xf8] sm:$0xff] %vm316, %v315
      %s349 = smul.u32 32, %s14
      %p350 = scmp.lt.s32.totalorder %s349, 63
      %s351 = scalar_select %p350, %s349, 63
      %s352 = smul.addr %s351, 8
      %s353 = scalar_lea.vmem %s3, %s352
      // Predicated region
      $region33: #{cnn_block_forward.3} parent=31 // pred_check
        %p354 = pneg %p100
      $region34: #{cnn_block_forward.3} parent=31 // pred_check_branch
        %356 = sbr.rel (%p354) target = $region36
      $region35: #{cnn_block_forward.3} parent=31 // pred_region
        %s357 = smul.u32 32, %s14
      $region36: #{cnn_block_forward.3} parent=31 // pred_fallthru
        _
    $region32: #{cnn_block_forward.3} parent=5 // pred_fallthru
      _
    %p358 = scmp.le.s32.totalorder 2, %s9
    // Predicated region
    $region37: #{cnn_block_forward.3} parent=5 // pred_check
      %p359 = pneg %p358
    $region38: #{cnn_block_forward.3} parent=5 // pred_check_branch
      %361 = sbr.rel (%p359) target = $region40
    $region39: #{cnn_block_forward.3} parent=5 // pred_region
      %s362 = ssub.s32 %s9, 2
      // Predicated region
      $region41: #{cnn_block_forward.3} parent=39 // pred_check
        %p363 = pneg %p106
      $region42: #{cnn_block_forward.3} parent=39 // pred_check_branch
        %365 = sbr.rel (%p363) target = $region44
      $region43: #{cnn_block_forward.3} parent=39 // pred_region
        %s366 = smul.u32 32, %s15
        %p367 = scmp.lt.s32.totalorder %s366, 63
        %s368 = scalar_select %p367, %s366, 63
        %s369 = smul.addr %s368, 8
        %s370 = scalar_lea.vmem %s3, %s369
      $region44: #{cnn_block_forward.3} parent=39 // pred_fallthru
        _
    $region40: #{cnn_block_forward.3} parent=5 // pred_fallthru
      _
  $region6: #{cnn_block_forward.3} parent=0 // loop_footer
    %s13 = sadd.s32 1, %s9
  $region7: #{cnn_block_forward.3} parent=0 // loop_footer_branch
    %8 = sbr.rel target = $region3
  $region8: #{cnn_block_forward.3} parent=0 // loop_exit
    _

// kernel: cnn_block_forward.2
$region0: #{cnn_block_forward.2}
  #allocation0 [shape = 'u32[]', space=smem, size = 0x4, offset = 0x4, fixed_abs, tag = 'smem constant byte address 0x4 - core index']
  #allocation1 [shape = 'u32[144,128]{1,0:T(1,128)}', space=vmem, size = 0x12000, scoped, tag = 'internal scratch']
  %s0 = inlined_call_operand.vmem [shape: f32[2,18,18,4], index: 0, kind: input, shape index: {}]
  %s1 = inlined_call_operand.vmem [shape: f32[36,8], index: 1, kind: input, shape index: {}]
  %s2 = inlined_call_operand.vmem [shape: f32[1,8], index: 2, kind: input, shape index: {}]
  %s3 = inlined_call_operand.vmem [shape: f32[2,16,16,8], index: 3, kind: output, shape index: {0}]
  %s4 = inlined_call_operand.vmem [shape: f32[2,1,8], index: 4, kind: output, shape index: {1}]
  %s5 = inlined_call_operand.vmem [shape: f32[2,1,8], index: 5, kind: output, shape index: {2}]
  %6 = xla_tuple %s3, %s4, %s5
  %s7 = sld [smem:[#allocation0]]
  $region61: #{cnn_block_forward.2} parent=0
    _
  %s9 = ssub.s32 1, %s7
  %s10 = scalar_select 0, %s9, %s7
  loop: start=0, step=1, limit=4
  $region2: #{cnn_block_forward.2} parent=0 // loop_pre_header
    _
  $region3: #{cnn_block_forward.2} parent=0 // loop_header
    %s12 = sphi 0, %s16
    %p13 = scmp.ge.s32.totalorder %s12, 4
    %s22 = sphi 0, %s24
    %s25 = sphi 0, %s22
    %s26 = sphi 0, %s25
    %s42 = sphi 0, %s26
    %s46 = sphi 0, %s46
    %s48 = sphi 0, %s46
    %s49 = sphi 0, %s48
    %s63 = sphi 0, %s49
    %s67 = sphi 0, %s67
    %s69 = sphi 0, %s67
    %s70 = sphi 0, %s69
    %s84 = sphi 0, %s70
    %s90 = sphi 0, %s92
    %s93 = sphi 0, %s90
    %s94 = sphi 0, %s93
    %s110 = sphi 0, %s94
    %s116 = sphi 0, %s118
    %s119 = sphi 0, %s116
    %s120 = sphi 0, %s119
    %s136 = sphi 0, %s120
    %s142 = sphi 0, %s144
    %s145 = sphi 0, %s142
    %s146 = sphi 0, %s145
    %s162 = sphi 0, %s146
  $region4: #{cnn_block_forward.2} parent=0 // loop_header_branch
    %15 = sbr.rel (%p13) target = $region8
  $region5: #{cnn_block_forward.2} parent=0 // loop_body
    %s17 = ssub.s32 %s12, 1
    %s18 = ssub.s32 %s12, 2
    %s19 = sadd.s32 %s12, 1
    %s20 = ssub.s32 %s12, %s19
    %p21 = scmp.eq.s32.totalorder %s20, 0
    %s23 = sadd.s32 %s22, 1
    %s24 = scalar_select %p21, %s22, %s23
    %p27 = pneg %p21
    %p28 = scmp.eq.s32.totalorder %s12, 1
    %p29 = por %p27, %p28
    %p30 = scmp.ne.s32.totalorder %s22, %s25
    %p31 = scmp.eq.s32.totalorder %s12, 0
    %p32 = por %p30, %p31
    %p33 = scmp.ne.s32.totalorder %s22, %s25
    %p34 = scmp.eq.s32.totalorder %s17, 1
    %p35 = por %p33, %p34
    %p36 = scmp.ne.s32.totalorder %s25, %s26
    %p37 = scmp.eq.s32.totalorder %s17, 0
    %p38 = por %p36, %p37
    %p39 = scmp.ne.s32.totalorder %s25, %s26
    %p40 = scmp.eq.s32.totalorder %s18, 1
    %p41 = por %p39, %p40
    %p43 = scmp.ne.s32.totalorder %s26, %s42
    %p44 = scmp.eq.s32.totalorder %s18, 0
    %p45 = por %p43, %p44
    %s47 = sadd.s32 %s46, 1
    %p50 = scmp.eq.s32.totalorder %s12, 1
    %p51 = scmp.ne.s32.totalorder %s46, %s48
    %p52 = scmp.eq.s32.totalorder %s12, 0
    %p53 = por %p51, %p52
    %p54 = scmp.ne.s32.totalorder %s46, %s48
    %p55 = scmp.eq.s32.totalorder %s17, 1
    %p56 = por %p54, %p55
    %p57 = scmp.ne.s32.totalorder %s48, %s49
    %p58 = scmp.eq.s32.totalorder %s17, 0
    %p59 = por %p57, %p58
    %p60 = scmp.ne.s32.totalorder %s48, %s49
    %p61 = scmp.eq.s32.totalorder %s18, 1
    %p62 = por %p60, %p61
    %p64 = scmp.ne.s32.totalorder %s49, %s63
    %p65 = scmp.eq.s32.totalorder %s18, 0
    %p66 = por %p64, %p65
    %s68 = sadd.s32 %s67, 1
    %p71 = scmp.eq.s32.totalorder %s12, 1
    %p72 = scmp.ne.s32.totalorder %s67, %s69
    %p73 = scmp.eq.s32.totalorder %s12, 0
    %p74 = por %p72, %p73
    %p75 = scmp.ne.s32.totalorder %s67, %s69
    %p76 = scmp.eq.s32.totalorder %s17, 1
    %p77 = por %p75, %p76
    %p78 = scmp.ne.s32.totalorder %s69, %s70
    %p79 = scmp.eq.s32.totalorder %s17, 0
    %p80 = por %p78, %p79
    %p81 = scmp.ne.s32.totalorder %s69, %s70
    %p82 = scmp.eq.s32.totalorder %s18, 1
    %p83 = por %p81, %p82
    %p85 = scmp.ne.s32.totalorder %s70, %s84
    %p86 = scmp.eq.s32.totalorder %s18, 0
    %p87 = por %p85, %p86
    %s88 = ssub.s32 %s12, %s19
    %p89 = scmp.eq.s32.totalorder %s88, 0
    %s91 = sadd.s32 %s90, 1
    %s92 = scalar_select %p89, %s90, %s91
    %p95 = pneg %p89
    %p96 = scmp.eq.s32.totalorder %s12, 1
    %p97 = por %p95, %p96
    %p98 = scmp.ne.s32.totalorder %s90, %s93
    %p99 = scmp.eq.s32.totalorder %s12, 0
    %p100 = por %p98, %p99
    %p101 = scmp.ne.s32.totalorder %s90, %s93
    %p102 = scmp.eq.s32.totalorder %s17, 1
    %p103 = por %p101, %p102
    %p104 = scmp.ne.s32.totalorder %s93, %s94
    %p105 = scmp.eq.s32.totalorder %s17, 0
    %p106 = por %p104, %p105
    %p107 = scmp.ne.s32.totalorder %s93, %s94
    %p108 = scmp.eq.s32.totalorder %s18, 1
    %p109 = por %p107, %p108
    %p111 = scmp.ne.s32.totalorder %s94, %s110
    %p112 = scmp.eq.s32.totalorder %s18, 0
    %p113 = por %p111, %p112
    %s114 = ssub.s32 %s12, %s19
    %p115 = scmp.eq.s32.totalorder %s114, 0
    %s117 = sadd.s32 %s116, 1
    %s118 = scalar_select %p115, %s116, %s117
    %p121 = pneg %p115
    %p122 = scmp.eq.s32.totalorder %s12, 1
    %p123 = por %p121, %p122
    %p124 = scmp.ne.s32.totalorder %s116, %s119
    %p125 = scmp.eq.s32.totalorder %s12, 0
    %p126 = por %p124, %p125
    %p127 = scmp.ne.s32.totalorder %s116, %s119
    %p128 = scmp.eq.s32.totalorder %s17, 1
    %p129 = por %p127, %p128
    %p130 = scmp.ne.s32.totalorder %s119, %s120
    %p131 = scmp.eq.s32.totalorder %s17, 0
    %p132 = por %p130, %p131
    %p133 = scmp.ne.s32.totalorder %s119, %s120
    %p134 = scmp.eq.s32.totalorder %s18, 1
    %p135 = por %p133, %p134
    %p137 = scmp.ne.s32.totalorder %s120, %s136
    %p138 = scmp.eq.s32.totalorder %s18, 0
    %p139 = por %p137, %p138
    %s140 = ssub.s32 %s12, %s19
    %p141 = scmp.eq.s32.totalorder %s140, 0
    %s143 = sadd.s32 %s142, 1
    %s144 = scalar_select %p141, %s142, %s143
    %p147 = pneg %p141
    %p148 = scmp.eq.s32.totalorder %s12, 1
    %p149 = por %p147, %p148
    %p150 = scmp.ne.s32.totalorder %s142, %s145
    %p151 = scmp.eq.s32.totalorder %s12, 0
    %p152 = por %p150, %p151
    %p153 = scmp.ne.s32.totalorder %s142, %s145
    %p154 = scmp.eq.s32.totalorder %s17, 1
    %p155 = por %p153, %p154
    %p156 = scmp.ne.s32.totalorder %s145, %s146
    %p157 = scmp.eq.s32.totalorder %s17, 0
    %p158 = por %p156, %p157
    %p159 = scmp.ne.s32.totalorder %s145, %s146
    %p160 = scmp.eq.s32.totalorder %s18, 1
    %p161 = por %p159, %p160
    %p163 = scmp.ne.s32.totalorder %s146, %s162
    %p164 = scmp.eq.s32.totalorder %s18, 0
    %p165 = por %p163, %p164
    %p166 = scmp.le.s32.totalorder 1, %s12
    %p167 = scmp.lt.s32.totalorder %s12, 3
    %p168 = pnand %p166, %p167
    %p169 = pneg %p168
    // Predicated region
    $region9: #{cnn_block_forward.2} parent=5 // pred_check
      _
    $region10: #{cnn_block_forward.2} parent=5 // pred_check_branch
      %171 = sbr.rel (%p168) target = $region12
    $region11: #{cnn_block_forward.2} parent=5 // pred_region
      %s172 = ssub.s32 %s12, 1
      // Predicated region
      $region13: #{cnn_block_forward.2} parent=11 // pred_check
        %p173 = pneg %p59
      $region14: #{cnn_block_forward.2} parent=11 // pred_check_branch
        %175 = sbr.rel (%p173) target = $region16
      $region15: #{cnn_block_forward.2} parent=11 // pred_region
        _
      $region16: #{cnn_block_forward.2} parent=11 // pred_fallthru
        _
      // Predicated region
      $region17: #{cnn_block_forward.2} parent=11 // pred_check
        %p176 = pneg %p80
      $region18: #{cnn_block_forward.2} parent=11 // pred_check_branch
        %178 = sbr.rel (%p176) target = $region20
      $region19: #{cnn_block_forward.2} parent=11 // pred_region
        _
      $region20: #{cnn_block_forward.2} parent=11 // pred_fallthru
        _
    $region12: #{cnn_block_forward.2} parent=5 // pred_fallthru
      _
    %p179 = scmp.lt.s32.totalorder %s12, 2
    // Predicated region
    $region21: #{cnn_block_forward.2} parent=5 // pred_check
      %p180 = pneg %p179
    $region22: #{cnn_block_forward.2} parent=5 // pred_check_branch
      %182 = sbr.rel (%p180) target = $region24
    $region23: #{cnn_block_forward.2} parent=5 // pred_region
      // Predicated region
      $region25: #{cnn_block_forward.2} parent=23 // pred_check
        %p183 = pneg %p32
      $region26: #{cnn_block_forward.2} parent=23 // pred_check_branch
        %185 = sbr.rel (%p183) target = $region28
      $region27: #{cnn_block_forward.2} parent=23 // pred_region
        %p186 = scmp.lt.s32.totalorder %s12, 1
        %s187 = scalar_select %p186, %s12, 1
        %s188 = smul.addr %s187, 54
        %s189 = smul.addr %s188, 8
        %s190 = scalar_lea.vmem %s0, %s189
      $region28: #{cnn_block_forward.2} parent=23 // pred_fallthru
        _
    $region24: #{cnn_block_forward.2} parent=5 // pred_fallthru
      _
    %p191 = scmp.le.s32.totalorder 1, %s12
    %p192 = scmp.lt.s32.totalorder %s12, 3
    %p193 = pnand %p191, %p192
    %p194 = pneg %p193
    // Predicated region
    $region29: #{cnn_block_forward.2} parent=5 // pred_check
      _
    $region30: #{cnn_block_forward.2} parent=5 // pred_check_branch
      %196 = sbr.rel (%p193) target = $region32
    $region31: #{cnn_block_forward.2} parent=5 // pred_region
      %s197 = ssub.s32 %s12, 1
      %p198 = scmp.lt.s32.totalorder %s17, 1
      %s199 = scalar_select %p198, %s17, 1
      %s200 = smul.addr %s199, 54
      %s201 = smul.addr %s200, 8
      %s202 = scalar_lea.vmem %s0, %s201
      %p203 = pneg %p38
      %p204 = pneg %p35
      %p205 = pneg %p59
      %p206 = pneg %p56
      %p207 = pneg %p80
      %p208 = pneg %p77
      %p209 = pneg %p106
      %p210 = pneg %p103
      %p211 = scmp.lt.s32.totalorder %s17, 1
      %s212 = scalar_select %p211, %s17, 1
      %s213 = smul.addr %s212, 32
      %s214 = smul.addr %s213, 8
      %s215 = scalar_lea.vmem %s3, %s214
      %p216 = pneg %p132
      %p217 = pneg %p129
      %p218 = scmp.lt.s32.totalorder %s17, 1
      %s219 = scalar_select %p218, %s17, 1
      %s220 = scalar_lea.vmem %s4, %s219
      %p221 = pneg %p158
      %p222 = pneg %p155
      %p223 = scmp.lt.s32.totalorder %s17, 1
      %s224 = scalar_select %p223, %s17, 1
      %s225 = scalar_lea.vmem %s5, %s224
      %p226 = scmp.lt.s32.totalorder %s17, 1
      %s227 = scalar_select %p226, %s17, 1
      %s228 = smul.addr %s227, 54
      %s229 = smul.addr %s228, 8
      %s230 = scalar_lea.vmem %s0, %s229
      %p231 = scmp.lt.s32.totalorder %s17, 1
      %s232 = scalar_select %p231, %s17, 1
      %s233 = smul.addr %s232, 32
      %s234 = smul.addr %s233, 8
      %s235 = scalar_lea.vmem %s3, %s234
      %p236 = scmp.lt.s32.totalorder %s17, 1
      %s237 = scalar_select %p236, %s17, 1
      %s238 = scalar_lea.vmem %s4, %s237
      %p239 = scmp.lt.s32.totalorder %s17, 1
      %s240 = scalar_select %p239, %s17, 1
      %s241 = scalar_lea.vmem %s5, %s240
      %v242 = vld [vmem:[%s230] sm:$0xff]
      %v243 = vld [vmem:[%s230 + $0x8] sm:$0xff]
      %v244 = vld [vmem:[%s230 + $0x10] sm:$0x3]
      %v245 = vld [vmem:[%s230 + $0x18] sm:$0xff]
      %v246 = vld [vmem:[%s230 + $0x20] sm:$0xff]
      %v247 = vld [vmem:[%s230 + $0x28] sm:$0x3]
      %v248 = vld [vmem:[%s230 + $0x30] sm:$0xff]
      %v249 = vld [vmem:[%s230 + $0x38] sm:$0xff]
      %v250 = vld [vmem:[%s230 + $0x40] sm:$0x3]
      %v251 = vld [vmem:[%s230 + $0x48] sm:$0xff]
      %v252 = vld [vmem:[%s230 + $0x50] sm:$0xff]
      %v253 = vld [vmem:[%s230 + $0x58] sm:$0x3]
      %v254 = vld [vmem:[%s230 + $0x60] sm:$0xff]
      %v255 = vld [vmem:[%s230 + $0x68] sm:$0xff]
      %v256 = vld [vmem:[%s230 + $0x70] sm:$0x3]
      %v257 = vld [vmem:[%s230 + $0x78] sm:$0xff]
      %v258 = vld [vmem:[%s230 + $0x80] sm:$0xff]
      %v259 = vld [vmem:[%s230 + $0x88] sm:$0x3]
      %v260 = vld [vmem:[%s230 + $0x90] sm:$0xff]
      %v261 = vld [vmem:[%s230 + $0x98] sm:$0xff]
      %v262 = vld [vmem:[%s230 + $0xa0] sm:$0x3]
      %v263 = vld [vmem:[%s230 + $0xa8] sm:$0xff]
      %v264 = vld [vmem:[%s230 + $0xb0] sm:$0xff]
      %v265 = vld [vmem:[%s230 + $0xb8] sm:$0x3]
      %v266 = vld [vmem:[%s230 + $0xc0] sm:$0xff]
      %v267 = vld [vmem:[%s230 + $0xc8] sm:$0xff]
      %v268 = vld [vmem:[%s230 + $0xd0] sm:$0x3]
      %v269 = vld [vmem:[%s230 + $0xd8] sm:$0xff]
      %v270 = vld [vmem:[%s230 + $0xe0] sm:$0xff]
      %v271 = vld [vmem:[%s230 + $0xe8] sm:$0x3]
      %v272 = vld [vmem:[%s230 + $0xf0] sm:$0xff]
      %v273 = vld [vmem:[%s230 + $0xf8] sm:$0xff]
      %v274 = vld [vmem:[%s230 + $0x100] sm:$0x3]
      %v275 = vld [vmem:[%s230 + $0x108] sm:$0xff]
      %v276 = vld [vmem:[%s230 + $0x110] sm:$0xff]
      %v277 = vld [vmem:[%s230 + $0x118] sm:$0x3]
      %v278 = vld [vmem:[%s230 + $0x120] sm:$0xff]
      %v279 = vld [vmem:[%s230 + $0x128] sm:$0xff]
      %v280 = vld [vmem:[%s230 + $0x130] sm:$0x3]
      %v281 = vld [vmem:[%s230 + $0x138] sm:$0xff]
      %v282 = vld [vmem:[%s230 + $0x140] sm:$0xff]
      %v283 = vld [vmem:[%s230 + $0x148] sm:$0x3]
      %v284 = vld [vmem:[%s230 + $0x150] sm:$0xff]
      %v285 = vld [vmem:[%s230 + $0x158] sm:$0xff]
      %v286 = vld [vmem:[%s230 + $0x160] sm:$0x3]
      %v287 = vld [vmem:[%s230 + $0x168] sm:$0xff]
      %v288 = vld [vmem:[%s230 + $0x170] sm:$0xff]
      %v289 = vld [vmem:[%s230 + $0x178] sm:$0x3]
      %v290 = vld [vmem:[%s230 + $0x180] sm:$0xff]
      %v291 = vld [vmem:[%s230 + $0x188] sm:$0xff]
      %v292 = vld [vmem:[%s230 + $0x190] sm:$0x3]
      %v293 = vld [vmem:[%s230 + $0x198] sm:$0xff]
      %v294 = vld [vmem:[%s230 + $0x1a0] sm:$0xff]
      %v295 = vld [vmem:[%s230 + $0x1a8] sm:$0x3]
      %vm344 = vcmask 1046528
      %v345 = vrot.slane %v242, 1
      %v346 = vrot.slane %v243, 1
      %v347 = vsel %vm344, %v345, %v346
      %v348 = vrot.slane %v244, 1
      %v349 = vsel %vm344, %v346, %v348
      %v350 = vrot.slane %v245, 1
      %v351 = vrot.slane %v246, 1
      %v352 = vsel %vm344, %v350, %v351
      %v353 = vrot.slane %v247, 1
      %v354 = vsel %vm344, %v351, %v353
      %v355 = vrot.slane %v248, 1
      %v356 = vrot.slane %v249, 1
      %v357 = vsel %vm344, %v355, %v356
      %v358 = vrot.slane %v250, 1
      %v359 = vsel %vm344, %v356, %v358
      %v360 = vrot.slane %v251, 1
      %v361 = vrot.slane %v252, 1
      %v362 = vsel %vm344, %v360, %v361
      %v363 = vrot.slane %v253, 1
      %v364 = vsel %vm344, %v361, %v363
      %v365 = vrot.slane %v254, 1
      %v366 = vrot.slane %v255, 1
      %v367 = vsel %vm344, %v365, %v366
      %v368 = vrot.slane %v256, 1
      %v369 = vsel %vm344, %v366, %v368
      %v370 = vrot.slane %v257, 1
      %v371 = vrot.slane %v258, 1
      %v372 = vsel %vm344, %v370, %v371
      %v373 = vrot.slane %v259, 1
      %v374 = vsel %vm344, %v371, %v373
      %v375 = vrot.slane %v260, 1
      %v376 = vrot.slane %v261, 1
      %v377 = vsel %vm344, %v375, %v376
      %v378 = vrot.slane %v262, 1
      %v379 = vsel %vm344, %v376, %v378
      %v380 = vrot.slane %v263, 1
      %v381 = vrot.slane %v264, 1
      %v382 = vsel %vm344, %v380, %v381
      %v383 = vrot.slane %v265, 1
      %v384 = vsel %vm344, %v381, %v383
      %v385 = vrot.slane %v266, 1
      %v386 = vrot.slane %v267, 1
      %v387 = vsel %vm344, %v385, %v386
      %v388 = vrot.slane %v268, 1
      %v389 = vsel %vm344, %v386, %v388
      %v390 = vrot.slane %v269, 1
      %v391 = vrot.slane %v270, 1
      %v392 = vsel %vm344, %v390, %v391
      %v393 = vrot.slane %v271, 1
      %v394 = vsel %vm344, %v391, %v393
      %v395 = vrot.slane %v272, 1
      %v396 = vrot.slane %v273, 1
      %v397 = vsel %vm344, %v395, %v396
      %v398 = vrot.slane %v274, 1
      %v399 = vsel %vm344, %v396, %v398
      %v400 = vrot.slane %v275, 1
      %v401 = vrot.slane %v276, 1
      %v402 = vsel %vm344, %v400, %v401
      %v403 = vrot.slane %v277, 1
      %v404 = vsel %vm344, %v401, %v403
      %v405 = vrot.slane %v278, 1
      %v406 = vrot.slane %v279, 1
      %v407 = vsel %vm344, %v405, %v406
      %v408 = vrot.slane %v280, 1
      %v409 = vsel %vm344, %v406, %v408
      %v410 = vrot.slane %v281, 1
      %v411 = vrot.slane %v282, 1
      %v412 = vsel %vm344, %v410, %v411
      %v413 = vrot.slane %v283, 1
      %v414 = vsel %vm344, %v411, %v413
      %v415 = vrot.slane %v284, 1
      %v416 = vrot.slane %v285, 1
      %v417 = vsel %vm344, %v415, %v416
      %v418 = vrot.slane %v286, 1
      %v419 = vsel %vm344, %v416, %v418
      %v420 = vrot.slane %v287, 1
      %v421 = vrot.slane %v288, 1
      %v422 = vsel %vm344, %v420, %v421
      %v423 = vrot.slane %v289, 1
      %v424 = vsel %vm344, %v421, %v423
      %vm425 = vcmask 1045504
      %v426 = vrot.slane %v242, 2
      %v427 = vrot.slane %v243, 2
      %v428 = vsel %vm425, %v426, %v427
      %v429 = vrot.slane %v244, 2
      %v430 = vsel %vm425, %v427, %v429
      %v431 = vrot.slane %v245, 2
      %v432 = vrot.slane %v246, 2
      %v433 = vsel %vm425, %v431, %v432
      %v434 = vrot.slane %v247, 2
      %v435 = vsel %vm425, %v432, %v434
      %v436 = vrot.slane %v248, 2
      %v437 = vrot.slane %v249, 2
      %v438 = vsel %vm425, %v436, %v437
      %v439 = vrot.slane %v250, 2
      %v440 = vsel %vm425, %v437, %v439
      %v441 = vrot.slane %v251, 2
      %v442 = vrot.slane %v252, 2
      %v443 = vsel %vm425, %v441, %v442
      %v444 = vrot.slane %v253, 2
      %v445 = vsel %vm425, %v442, %v444
      %v446 = vrot.slane %v254, 2
      %v447 = vrot.slane %v255, 2
      %v448 = vsel %vm425, %v446, %v447
      %v449 = vrot.slane %v256, 2
      %v450 = vsel %vm425, %v447, %v449
      %v451 = vrot.slane %v257, 2
      %v452 = vrot.slane %v258, 2
      %v453 = vsel %vm425, %v451, %v452
      %v454 = vrot.slane %v259, 2
      %v455 = vsel %vm425, %v452, %v454
      %v456 = vrot.slane %v260, 2
      %v457 = vrot.slane %v261, 2
      %v458 = vsel %vm425, %v456, %v457
      %v459 = vrot.slane %v262, 2
      %v460 = vsel %vm425, %v457, %v459
      %v461 = vrot.slane %v263, 2
      %v462 = vrot.slane %v264, 2
      %v463 = vsel %vm425, %v461, %v462
      %v464 = vrot.slane %v265, 2
      %v465 = vsel %vm425, %v462, %v464
      %v466 = vrot.slane %v266, 2
      %v467 = vrot.slane %v267, 2
      %v468 = vsel %vm425, %v466, %v467
      %v469 = vrot.slane %v268, 2
      %v470 = vsel %vm425, %v467, %v469
      %v471 = vrot.slane %v269, 2
      %v472 = vrot.slane %v270, 2
      %v473 = vsel %vm425, %v471, %v472
      %v474 = vrot.slane %v271, 2
      %v475 = vsel %vm425, %v472, %v474
      %v476 = vrot.slane %v272, 2
      %v477 = vrot.slane %v273, 2
      %v478 = vsel %vm425, %v476, %v477
      %v479 = vrot.slane %v274, 2
      %v480 = vsel %vm425, %v477, %v479
      %v481 = vrot.slane %v275, 2
      %v482 = vrot.slane %v276, 2
      %v483 = vsel %vm425, %v481, %v482
      %v484 = vrot.slane %v277, 2
      %v485 = vsel %vm425, %v482, %v484
      %v486 = vrot.slane %v278, 2
      %v487 = vrot.slane %v279, 2
      %v488 = vsel %vm425, %v486, %v487
      %v489 = vrot.slane %v280, 2
      %v490 = vsel %vm425, %v487, %v489
      %v491 = vrot.slane %v281, 2
      %v492 = vrot.slane %v282, 2
      %v493 = vsel %vm425, %v491, %v492
      %v494 = vrot.slane %v283, 2
      %v495 = vsel %vm425, %v492, %v494
      %v496 = vrot.slane %v284, 2
      %v497 = vrot.slane %v285, 2
      %v498 = vsel %vm425, %v496, %v497
      %v499 = vrot.slane %v286, 2
      %v500 = vsel %vm425, %v497, %v499
      %v501 = vrot.slane %v287, 2
      %v502 = vrot.slane %v288, 2
      %v503 = vsel %vm425, %v501, %v502
      %v504 = vrot.slane %v289, 2
      %v505 = vsel %vm425, %v502, %v504
      %v509 = vrot.slane %v290, 1
      %v510 = vrot.slane %v291, 1
      %v511 = vsel %vm344, %v509, %v510
      %v512 = vrot.slane %v292, 1
      %v513 = vsel %vm344, %v510, %v512
      %v514 = vrot.slane %v290, 2
      %v515 = vrot.slane %v291, 2
      %v516 = vsel %vm425, %v514, %v515
      %v517 = vrot.slane %v292, 2
      %v518 = vsel %vm425, %v515, %v517
      %v522 = vrot.slane %v293, 1
      %v523 = vrot.slane %v294, 1
      %v524 = vsel %vm344, %v522, %v523
      %v525 = vrot.slane %v295, 1
      %v526 = vsel %vm344, %v523, %v525
      %v527 = vrot.slane %v293, 2
      %v528 = vrot.slane %v294, 2
      %v529 = vsel %vm425, %v527, %v528
      %v530 = vrot.slane %v295, 2
      %v531 = vsel %vm425, %v528, %v530
      %532 = vrot.lane.b32.xlu0 %v347, 4
      %v533 = vpop.permute.xlu0 %532
      %534 = vrot.lane.b32.xlu0 %v349, 4
      %v535 = vpop.permute.xlu0 %534
      %536 = vrot.lane.b32.xlu0 %v352, 4
      %v537 = vpop.permute.xlu0 %536
      %538 = vrot.lane.b32.xlu0 %v354, 4
      %v539 = vpop.permute.xlu0 %538
      %540 = vrot.lane.b32.xlu0 %v357, 4
      %v541 = vpop.permute.xlu0 %540
      %542 = vrot.lane.b32.xlu0 %v359, 4
      %v543 = vpop.permute.xlu0 %542
      %544 = vrot.lane.b32.xlu0 %v362, 4
      %v545 = vpop.permute.xlu0 %544
      %546 = vrot.lane.b32.xlu0 %v364, 4
      %v547 = vpop.permute.xlu0 %546
      %548 = vrot.lane.b32.xlu0 %v367, 4
      %v549 = vpop.permute.xlu0 %548
      %550 = vrot.lane.b32.xlu0 %v369, 4
      %v551 = vpop.permute.xlu0 %550
      %552 = vrot.lane.b32.xlu0 %v372, 4
      %v553 = vpop.permute.xlu0 %552
      %554 = vrot.lane.b32.xlu0 %v374, 4
      %v555 = vpop.permute.xlu0 %554
      %556 = vrot.lane.b32.xlu0 %v377, 4
      %v557 = vpop.permute.xlu0 %556
      %558 = vrot.lane.b32.xlu0 %v379, 4
      %v559 = vpop.permute.xlu0 %558
      %560 = vrot.lane.b32.xlu0 %v382, 4
      %v561 = vpop.permute.xlu0 %560
      %562 = vrot.lane.b32.xlu0 %v384, 4
      %v563 = vpop.permute.xlu0 %562
      %564 = vrot.lane.b32.xlu0 %v387, 4
      %v565 = vpop.permute.xlu0 %564
      %566 = vrot.lane.b32.xlu0 %v389, 4
      %v567 = vpop.permute.xlu0 %566
      %568 = vrot.lane.b32.xlu0 %v392, 4
      %v569 = vpop.permute.xlu0 %568
      %570 = vrot.lane.b32.xlu0 %v394, 4
      %v571 = vpop.permute.xlu0 %570
      %572 = vrot.lane.b32.xlu0 %v397, 4
      %v573 = vpop.permute.xlu0 %572
      %574 = vrot.lane.b32.xlu0 %v399, 4
      %v575 = vpop.permute.xlu0 %574
      %576 = vrot.lane.b32.xlu0 %v402, 4
      %v577 = vpop.permute.xlu0 %576
      %578 = vrot.lane.b32.xlu0 %v404, 4
      %v579 = vpop.permute.xlu0 %578
      %580 = vrot.lane.b32.xlu0 %v407, 4
      %v581 = vpop.permute.xlu0 %580
      %582 = vrot.lane.b32.xlu0 %v409, 4
      %v583 = vpop.permute.xlu0 %582
      %584 = vrot.lane.b32.xlu0 %v412, 4
      %v585 = vpop.permute.xlu0 %584
      %586 = vrot.lane.b32.xlu0 %v414, 4
      %v587 = vpop.permute.xlu0 %586
      %588 = vrot.lane.b32.xlu0 %v417, 4
      %v589 = vpop.permute.xlu0 %588
      %590 = vrot.lane.b32.xlu0 %v419, 4
      %v591 = vpop.permute.xlu0 %590
      %592 = vrot.lane.b32.xlu0 %v422, 4
      %v593 = vpop.permute.xlu0 %592
      %594 = vrot.lane.b32.xlu0 %v424, 4
      %v595 = vpop.permute.xlu0 %594
      %628 = vrot.lane.b32.xlu0 %v428, 8
      %v629 = vpop.permute.xlu0 %628
      %630 = vrot.lane.b32.xlu0 %v430, 8
      %v631 = vpop.permute.xlu0 %630
      %632 = vrot.lane.b32.xlu0 %v433, 8
      %v633 = vpop.permute.xlu0 %632
      %634 = vrot.lane.b32.xlu0 %v435, 8
      %v635 = vpop.permute.xlu0 %634
      %636 = vrot.lane.b32.xlu0 %v438, 8
      %v637 = vpop.permute.xlu0 %636
      %638 = vrot.lane.b32.xlu0 %v440, 8
      %v639 = vpop.permute.xlu0 %638
      %640 = vrot.lane.b32.xlu0 %v443, 8
      %v641 = vpop.permute.xlu0 %640
      %642 = vrot.lane.b32.xlu0 %v445, 8
      %v643 = vpop.permute.xlu0 %642
      %644 = vrot.lane.b32.xlu0 %v448, 8
      %v645 = vpop.permute.xlu0 %644
      %646 = vrot.lane.b32.xlu0 %v450, 8
      %v647 = vpop.permute.xlu0 %646
      %648 = vrot.lane.b32.xlu0 %v453, 8
      %v649 = vpop.permute.xlu0 %648
      %650 = vrot.lane.b32.xlu0 %v455, 8
      %v651 = vpop.permute.xlu0 %650
      %652 = vrot.lane.b32.xlu0 %v458, 8
      %v653 = vpop.permute.xlu0 %652
      %654 = vrot.lane.b32.xlu0 %v460, 8
      %v655 = vpop.permute.xlu0 %654
      %656 = vrot.lane.b32.xlu0 %v463, 8
      %v657 = vpop.permute.xlu0 %656
      %658 = vrot.lane.b32.xlu0 %v465, 8
      %v659 = vpop.permute.xlu0 %658
      %660 = vrot.lane.b32.xlu0 %v468, 8
      %v661 = vpop.permute.xlu0 %660
      %662 = vrot.lane.b32.xlu0 %v470, 8
      %v663 = vpop.permute.xlu0 %662
      %664 = vrot.lane.b32.xlu0 %v473, 8
      %v665 = vpop.permute.xlu0 %664
      %666 = vrot.lane.b32.xlu0 %v475, 8
      %v667 = vpop.permute.xlu0 %666
      %668 = vrot.lane.b32.xlu0 %v478, 8
      %v669 = vpop.permute.xlu0 %668
      %670 = vrot.lane.b32.xlu0 %v480, 8
      %v671 = vpop.permute.xlu0 %670
      %672 = vrot.lane.b32.xlu0 %v483, 8
      %v673 = vpop.permute.xlu0 %672
      %674 = vrot.lane.b32.xlu0 %v485, 8
      %v675 = vpop.permute.xlu0 %674
      %676 = vrot.lane.b32.xlu0 %v488, 8
      %v677 = vpop.permute.xlu0 %676
      %678 = vrot.lane.b32.xlu0 %v490, 8
      %v679 = vpop.permute.xlu0 %678
      %680 = vrot.lane.b32.xlu0 %v493, 8
      %v681 = vpop.permute.xlu0 %680
      %682 = vrot.lane.b32.xlu0 %v495, 8
      %v683 = vpop.permute.xlu0 %682
      %684 = vrot.lane.b32.xlu0 %v498, 8
      %v685 = vpop.permute.xlu0 %684
      %686 = vrot.lane.b32.xlu0 %v500, 8
      %v687 = vpop.permute.xlu0 %686
      %688 = vrot.lane.b32.xlu0 %v503, 8
      %v689 = vpop.permute.xlu0 %688
      %690 = vrot.lane.b32.xlu0 %v505, 8
      %v691 = vpop.permute.xlu0 %690
      %724 = vrot.lane.b32.xlu0 %v245, 12
      %v725 = vpop.permute.xlu0 %724
      %726 = vrot.lane.b32.xlu0 %v246, 12
      %v727 = vpop.permute.xlu0 %726
      %728 = vrot.lane.b32.xlu0 %v248, 12
      %v729 = vpop.permute.xlu0 %728
      %730 = vrot.lane.b32.xlu0 %v249, 12
      %v731 = vpop.permute.xlu0 %730
      %732 = vrot.lane.b32.xlu0 %v251, 12
      %v733 = vpop.permute.xlu0 %732
      %734 = vrot.lane.b32.xlu0 %v252, 12
      %v735 = vpop.permute.xlu0 %734
      %736 = vrot.lane.b32.xlu0 %v254, 12
      %v737 = vpop.permute.xlu0 %736
      %738 = vrot.lane.b32.xlu0 %v255, 12
      %v739 = vpop.permute.xlu0 %738
      %740 = vrot.lane.b32.xlu0 %v257, 12
      %v741 = vpop.permute.xlu0 %740
      %742 = vrot.lane.b32.xlu0 %v258, 12
      %v743 = vpop.permute.xlu0 %742
      %744 = vrot.lane.b32.xlu0 %v260, 12
      %v745 = vpop.permute.xlu0 %744
      %746 = vrot.lane.b32.xlu0 %v261, 12
      %v747 = vpop.permute.xlu0 %746
      %748 = vrot.lane.b32.xlu0 %v263, 12
      %v749 = vpop.permute.xlu0 %748
      %750 = vrot.lane.b32.xlu0 %v264, 12
      %v751 = vpop.permute.xlu0 %750
      %752 = vrot.lane.b32.xlu0 %v266, 12
      %v753 = vpop.permute.xlu0 %752
      %754 = vrot.lane.b32.xlu0 %v267, 12
      %v755 = vpop.permute.xlu0 %754
      %756 = vrot.lane.b32.xlu0 %v269, 12
      %v757 = vpop.permute.xlu0 %756
      %758 = vrot.lane.b32.xlu0 %v270, 12
      %v759 = vpop.permute.xlu0 %758
      %760 = vrot.lane.b32.xlu0 %v272, 12
      %v761 = vpop.permute.xlu0 %760
      %762 = vrot.lane.b32.xlu0 %v273, 12
      %v763 = vpop.permute.xlu0 %762
      %764 = vrot.lane.b32.xlu0 %v275, 12
      %v765 = vpop.permute.xlu0 %764
      %766 = vrot.lane.b32.xlu0 %v276, 12
      %v767 = vpop.permute.xlu0 %766
      %768 = vrot.lane.b32.xlu0 %v278, 12
      %v769 = vpop.permute.xlu0 %768
      %770 = vrot.lane.b32.xlu0 %v279, 12
      %v771 = vpop.permute.xlu0 %770
      %772 = vrot.lane.b32.xlu0 %v281, 12
      %v773 = vpop.permute.xlu0 %772
      %774 = vrot.lane.b32.xlu0 %v282, 12
      %v775 = vpop.permute.xlu0 %774
      %776 = vrot.lane.b32.xlu0 %v284, 12
      %v777 = vpop.permute.xlu0 %776
      %778 = vrot.lane.b32.xlu0 %v285, 12
      %v779 = vpop.permute.xlu0 %778
      %780 = vrot.lane.b32.xlu0 %v287, 12
      %v781 = vpop.permute.xlu0 %780
      %782 = vrot.lane.b32.xlu0 %v288, 12
      %v783 = vpop.permute.xlu0 %782
      %784 = vrot.lane.b32.xlu0 %v290, 12
      %v785 = vpop.permute.xlu0 %784
      %786 = vrot.lane.b32.xlu0 %v291, 12
      %v787 = vpop.permute.xlu0 %786
      %820 = vrot.lane.b32.xlu0 %v352, 16
      %v821 = vpop.permute.xlu0 %820
      %822 = vrot.lane.b32.xlu0 %v354, 16
      %v823 = vpop.permute.xlu0 %822
      %824 = vrot.lane.b32.xlu0 %v357, 16
      %v825 = vpop.permute.xlu0 %824
      %826 = vrot.lane.b32.xlu0 %v359, 16
      %v827 = vpop.permute.xlu0 %826
      %828 = vrot.lane.b32.xlu0 %v362, 16
      %v829 = vpop.permute.xlu0 %828
      %830 = vrot.lane.b32.xlu0 %v364, 16
      %v831 = vpop.permute.xlu0 %830
      %832 = vrot.lane.b32.xlu0 %v367, 16
      %v833 = vpop.permute.xlu0 %832
      %834 = vrot.lane.b32.xlu0 %v369, 16
      %v835 = vpop.permute.xlu0 %834
      %836 = vrot.lane.b32.xlu0 %v372, 16
      %v837 = vpop.permute.xlu0 %836
      %838 = vrot.lane.b32.xlu0 %v374, 16
      %v839 = vpop.permute.xlu0 %838
      %840 = vrot.lane.b32.xlu0 %v377, 16
      %v841 = vpop.permute.xlu0 %840
      %842 = vrot.lane.b32.xlu0 %v379, 16
      %v843 = vpop.permute.xlu0 %842
      %844 = vrot.lane.b32.xlu0 %v382, 16
      %v845 = vpop.permute.xlu0 %844
      %846 = vrot.lane.b32.xlu0 %v384, 16
      %v847 = vpop.permute.xlu0 %846
      %848 = vrot.lane.b32.xlu0 %v387, 16
      %v849 = vpop.permute.xlu0 %848
      %850 = vrot.lane.b32.xlu0 %v389, 16
      %v851 = vpop.permute.xlu0 %850
      %852 = vrot.lane.b32.xlu0 %v392, 16
      %v853 = vpop.permute.xlu0 %852
      %854 = vrot.lane.b32.xlu0 %v394, 16
      %v855 = vpop.permute.xlu0 %854
      %856 = vrot.lane.b32.xlu0 %v397, 16
      %v857 = vpop.permute.xlu0 %856
      %858 = vrot.lane.b32.xlu0 %v399, 16
      %v859 = vpop.permute.xlu0 %858
      %860 = vrot.lane.b32.xlu0 %v402, 16
      %v861 = vpop.permute.xlu0 %860
      %862 = vrot.lane.b32.xlu0 %v404, 16
      %v863 = vpop.permute.xlu0 %862
      %864 = vrot.lane.b32.xlu0 %v407, 16
      %v865 = vpop.permute.xlu0 %864
      %866 = vrot.lane.b32.xlu0 %v409, 16
      %v867 = vpop.permute.xlu0 %866
      %868 = vrot.lane.b32.xlu0 %v412, 16
      %v869 = vpop.permute.xlu0 %868
      %870 = vrot.lane.b32.xlu0 %v414, 16
      %v871 = vpop.permute.xlu0 %870
      %872 = vrot.lane.b32.xlu0 %v417, 16
      %v873 = vpop.permute.xlu0 %872
      %874 = vrot.lane.b32.xlu0 %v419, 16
      %v875 = vpop.permute.xlu0 %874
      %876 = vrot.lane.b32.xlu0 %v422, 16
      %v877 = vpop.permute.xlu0 %876
      %878 = vrot.lane.b32.xlu0 %v424, 16
      %v879 = vpop.permute.xlu0 %878
      %880 = vrot.lane.b32.xlu0 %v511, 16
      %v881 = vpop.permute.xlu0 %880
      %882 = vrot.lane.b32.xlu0 %v513, 16
      %v883 = vpop.permute.xlu0 %882
      %916 = vrot.lane.b32.xlu0 %v433, 20
      %v917 = vpop.permute.xlu0 %916
      %918 = vrot.lane.b32.xlu0 %v435, 20
      %v919 = vpop.permute.xlu0 %918
      %920 = vrot.lane.b32.xlu0 %v438, 20
      %v921 = vpop.permute.xlu0 %920
      %922 = vrot.lane.b32.xlu0 %v440, 20
      %v923 = vpop.permute.xlu0 %922
      %924 = vrot.lane.b32.xlu0 %v443, 20
      %v925 = vpop.permute.xlu0 %924
      %926 = vrot.lane.b32.xlu0 %v445, 20
      %v927 = vpop.permute.xlu0 %926
      %928 = vrot.lane.b32.xlu0 %v448, 20
      %v929 = vpop.permute.xlu0 %928
      %930 = vrot.lane.b32.xlu0 %v450, 20
      %v931 = vpop.permute.xlu0 %930
      %932 = vrot.lane.b32.xlu0 %v453, 20
      %v933 = vpop.permute.xlu0 %932
      %934 = vrot.lane.b32.xlu0 %v455, 20
      %v935 = vpop.permute.xlu0 %934
      %936 = vrot.lane.b32.xlu0 %v458, 20
      %v937 = vpop.permute.xlu0 %936
      %938 = vrot.lane.b32.xlu0 %v460, 20
      %v939 = vpop.permute.xlu0 %938
      %940 = vrot.lane.b32.xlu0 %v463, 20
      %v941 = vpop.permute.xlu0 %940
      %942 = vrot.lane.b32.xlu0 %v465, 20
      %v943 = vpop.permute.xlu0 %942
      %944 = vrot.lane.b32.xlu0 %v468, 20
      %v945 = vpop.permute.xlu0 %944
      %946 = vrot.lane.b32.xlu0 %v470, 20
      %v947 = vpop.permute.xlu0 %946
      %948 = vrot.lane.b32.xlu0 %v473, 20
      %v949 = vpop.permute.xlu0 %948
      %950 = vrot.lane.b32.xlu0 %v475, 20
      %v951 = vpop.permute.xlu0 %950
      %952 = vrot.lane.b32.xlu0 %v478, 20
      %v953 = vpop.permute.xlu0 %952
      %954 = vrot.lane.b32.xlu0 %v480, 20
      %v955 = vpop.permute.xlu0 %954
      %956 = vrot.lane.b32.xlu0 %v483, 20
      %v957 = vpop.permute.xlu0 %956
      %958 = vrot.lane.b32.xlu0 %v485, 20
      %v959 = vpop.permute.xlu0 %958
      %960 = vrot.lane.b32.xlu0 %v488, 20
      %v961 = vpop.permute.xlu0 %960
      %962 = vrot.lane.b32.xlu0 %v490, 20
      %v963 = vpop.permute.xlu0 %962
      %964 = vrot.lane.b32.xlu0 %v493, 20
      %v965 = vpop.permute.xlu0 %964
      %966 = vrot.lane.b32.xlu0 %v495, 20
      %v967 = vpop.permute.xlu0 %966
      %968 = vrot.lane.b32.xlu0 %v498, 20
      %v969 = vpop.permute.xlu0 %968
      %970 = vrot.lane.b32.xlu0 %v500, 20
      %v971 = vpop.permute.xlu0 %970
      %972 = vrot.lane.b32.xlu0 %v503, 20
      %v973 = vpop.permute.xlu0 %972
      %974 = vrot.lane.b32.xlu0 %v505, 20
      %v975 = vpop.permute.xlu0 %974
      %976 = vrot.lane.b32.xlu0 %v516, 20
      %v977 = vpop.permute.xlu0 %976
      %978 = vrot.lane.b32.xlu0 %v518, 20
      %v979 = vpop.permute.xlu0 %978
      %1012 = vrot.lane.b32.xlu0 %v248, 24
      %v1013 = vpop.permute.xlu0 %1012
      %1014 = vrot.lane.b32.xlu0 %v249, 24
      %v1015 = vpop.permute.xlu0 %1014
      %1016 = vrot.lane.b32.xlu0 %v251, 24
      %v1017 = vpop.permute.xlu0 %1016
      %1018 = vrot.lane.b32.xlu0 %v252, 24
      %v1019 = vpop.permute.xlu0 %1018
      %1020 = vrot.lane.b32.xlu0 %v254, 24
      %v1021 = vpop.permute.xlu0 %1020
      %1022 = vrot.lane.b32.xlu0 %v255, 24
      %v1023 = vpop.permute.xlu0 %1022
      %1024 = vrot.lane.b32.xlu0 %v257, 24
      %v1025 = vpop.permute.xlu0 %1024
      %1026 = vrot.lane.b32.xlu0 %v258, 24
      %v1027 = vpop.permute.xlu0 %1026
      %1028 = vrot.lane.b32.xlu0 %v260, 24
      %v1029 = vpop.permute.xlu0 %1028
      %1030 = vrot.lane.b32.xlu0 %v261, 24
      %v1031 = vpop.permute.xlu0 %1030
      %1032 = vrot.lane.b32.xlu0 %v263, 24
      %v1033 = vpop.permute.xlu0 %1032
      %1034 = vrot.lane.b32.xlu0 %v264, 24
      %v1035 = vpop.permute.xlu0 %1034
      %1036 = vrot.lane.b32.xlu0 %v266, 24
      %v1037 = vpop.permute.xlu0 %1036
      %1038 = vrot.lane.b32.xlu0 %v267, 24
      %v1039 = vpop.permute.xlu0 %1038
      %1040 = vrot.lane.b32.xlu0 %v269, 24
      %v1041 = vpop.permute.xlu0 %1040
      %1042 = vrot.lane.b32.xlu0 %v270, 24
      %v1043 = vpop.permute.xlu0 %1042
      %1044 = vrot.lane.b32.xlu0 %v272, 24
      %v1045 = vpop.permute.xlu0 %1044
      %1046 = vrot.lane.b32.xlu0 %v273, 24
      %v1047 = vpop.permute.xlu0 %1046
      %1048 = vrot.lane.b32.xlu0 %v275, 24
      %v1049 = vpop.permute.xlu0 %1048
      %1050 = vrot.lane.b32.xlu0 %v276, 24
      %v1051 = vpop.permute.xlu0 %1050
      %1052 = vrot.lane.b32.xlu0 %v278, 24
      %v1053 = vpop.permute.xlu0 %1052
      %1054 = vrot.lane.b32.xlu0 %v279, 24
      %v1055 = vpop.permute.xlu0 %1054
      %1056 = vrot.lane.b32.xlu0 %v281, 24
      %v1057 = vpop.permute.xlu0 %1056
      %1058 = vrot.lane.b32.xlu0 %v282, 24
      %v1059 = vpop.permute.xlu0 %1058
      %1060 = vrot.lane.b32.xlu0 %v284, 24
      %v1061 = vpop.permute.xlu0 %1060
      %1062 = vrot.lane.b32.xlu0 %v285, 24
      %v1063 = vpop.permute.xlu0 %1062
      %1064 = vrot.lane.b32.xlu0 %v287, 24
      %v1065 = vpop.permute.xlu0 %1064
      %1066 = vrot.lane.b32.xlu0 %v288, 24
      %v1067 = vpop.permute.xlu0 %1066
      %1068 = vrot.lane.b32.xlu0 %v290, 24
      %v1069 = vpop.permute.xlu0 %1068
      %1070 = vrot.lane.b32.xlu0 %v291, 24
      %v1071 = vpop.permute.xlu0 %1070
      %1072 = vrot.lane.b32.xlu0 %v293, 24
      %v1073 = vpop.permute.xlu0 %1072
      %1074 = vrot.lane.b32.xlu0 %v294, 24
      %v1075 = vpop.permute.xlu0 %1074
      %1108 = vrot.lane.b32.xlu0 %v357, 28
      %v1109 = vpop.permute.xlu0 %1108
      %1110 = vrot.lane.b32.xlu0 %v359, 28
      %v1111 = vpop.permute.xlu0 %1110
      %1112 = vrot.lane.b32.xlu0 %v362, 28
      %v1113 = vpop.permute.xlu0 %1112
      %1114 = vrot.lane.b32.xlu0 %v364, 28
      %v1115 = vpop.permute.xlu0 %1114
      %1116 = vrot.lane.b32.xlu0 %v367, 28
      %v1117 = vpop.permute.xlu0 %1116
      %1118 = vrot.lane.b32.xlu0 %v369, 28
      %v1119 = vpop.permute.xlu0 %1118
      %1120 = vrot.lane.b32.xlu0 %v372, 28
      %v1121 = vpop.permute.xlu0 %1120
      %1122 = vrot.lane.b32.xlu0 %v374, 28
      %v1123 = vpop.permute.xlu0 %1122
      %1124 = vrot.lane.b32.xlu0 %v377, 28
      %v1125 = vpop.permute.xlu0 %1124
      %1126 = vrot.lane.b32.xlu0 %v379, 28
      %v1127 = vpop.permute.xlu0 %1126
      %1128 = vrot.lane.b32.xlu0 %v382, 28
      %v1129 = vpop.permute.xlu0 %1128
      %1130 = vrot.lane.b32.xlu0 %v384, 28
      %v1131 = vpop.permute.xlu0 %1130
      %1132 = vrot.lane.b32.xlu0 %v387, 28
      %v1133 = vpop.permute.xlu0 %1132
      %1134 = vrot.lane.b32.xlu0 %v389, 28
      %v1135 = vpop.permute.xlu0 %1134
      %1136 = vrot.lane.b32.xlu0 %v392, 28
      %v1137 = vpop.permute.xlu0 %1136
      %1138 = vrot.lane.b32.xlu0 %v394, 28
      %v1139 = vpop.permute.xlu0 %1138
      %1140 = vrot.lane.b32.xlu0 %v397, 28
      %v1141 = vpop.permute.xlu0 %1140
      %1142 = vrot.lane.b32.xlu0 %v399, 28
      %v1143 = vpop.permute.xlu0 %1142
      %1144 = vrot.lane.b32.xlu0 %v402, 28
      %v1145 = vpop.permute.xlu0 %1144
      %1146 = vrot.lane.b32.xlu0 %v404, 28
      %v1147 = vpop.permute.xlu0 %1146
      %1148 = vrot.lane.b32.xlu0 %v407, 28
      %v1149 = vpop.permute.xlu0 %1148
      %1150 = vrot.lane.b32.xlu0 %v409, 28
      %v1151 = vpop.permute.xlu0 %1150
      %1152 = vrot.lane.b32.xlu0 %v412, 28
      %v1153 = vpop.permute.xlu0 %1152
      %1154 = vrot.lane.b32.xlu0 %v414, 28
      %v1155 = vpop.permute.xlu0 %1154
      %1156 = vrot.lane.b32.xlu0 %v417, 28
      %v1157 = vpop.permute.xlu0 %1156
      %1158 = vrot.lane.b32.xlu0 %v419, 28
      %v1159 = vpop.permute.xlu0 %1158
      %1160 = vrot.lane.b32.xlu0 %v422, 28
      %v1161 = vpop.permute.xlu0 %1160
      %1162 = vrot.lane.b32.xlu0 %v424, 28
      %v1163 = vpop.permute.xlu0 %1162
      %1164 = vrot.lane.b32.xlu0 %v511, 28
      %v1165 = vpop.permute.xlu0 %1164
      %1166 = vrot.lane.b32.xlu0 %v513, 28
      %v1167 = vpop.permute.xlu0 %1166
      %1168 = vrot.lane.b32.xlu0 %v524, 28
      %v1169 = vpop.permute.xlu0 %1168
      %1170 = vrot.lane.b32.xlu0 %v526, 28
      %v1171 = vpop.permute.xlu0 %1170
      %1204 = vrot.lane.b32.xlu0 %v438, 32
      %v1205 = vpop.permute.xlu0 %1204
      %1206 = vrot.lane.b32.xlu0 %v440, 32
      %v1207 = vpop.permute.xlu0 %1206
      %1208 = vrot.lane.b32.xlu0 %v443, 32
      %v1209 = vpop.permute.xlu0 %1208
      %1210 = vrot.lane.b32.xlu0 %v445, 32
      %v1211 = vpop.permute.xlu0 %1210
      %1212 = vrot.lane.b32.xlu0 %v448, 32
      %v1213 = vpop.permute.xlu0 %1212
      %1214 = vrot.lane.b32.xlu0 %v450, 32
      %v1215 = vpop.permute.xlu0 %1214
      %1216 = vrot.lane.b32.xlu0 %v453, 32
      %v1217 = vpop.permute.xlu0 %1216
      %1218 = vrot.lane.b32.xlu0 %v455, 32
      %v1219 = vpop.permute.xlu0 %1218
      %1220 = vrot.lane.b32.xlu0 %v458, 32
      %v1221 = vpop.permute.xlu0 %1220
      %1222 = vrot.lane.b32.xlu0 %v460, 32
      %v1223 = vpop.permute.xlu0 %1222
      %1224 = vrot.lane.b32.xlu0 %v463, 32
      %v1225 = vpop.permute.xlu0 %1224
      %1226 = vrot.lane.b32.xlu0 %v465, 32
      %v1227 = vpop.permute.xlu0 %1226
      %1228 = vrot.lane.b32.xlu0 %v468, 32
      %v1229 = vpop.permute.xlu0 %1228
      %1230 = vrot.lane.b32.xlu0 %v470, 32
      %v1231 = vpop.permute.xlu0 %1230
      %1232 = vrot.lane.b32.xlu0 %v473, 32
      %v1233 = vpop.permute.xlu0 %1232
      %1234 = vrot.lane.b32.xlu0 %v475, 32
      %v1235 = vpop.permute.xlu0 %1234
      %1236 = vrot.lane.b32.xlu0 %v478, 32
      %v1237 = vpop.permute.xlu0 %1236
      %1238 = vrot.lane.b32.xlu0 %v480, 32
      %v1239 = vpop.permute.xlu0 %1238
      %1240 = vrot.lane.b32.xlu0 %v483, 32
      %v1241 = vpop.permute.xlu0 %1240
      %1242 = vrot.lane.b32.xlu0 %v485, 32
      %v1243 = vpop.permute.xlu0 %1242
      %1244 = vrot.lane.b32.xlu0 %v488, 32
      %v1245 = vpop.permute.xlu0 %1244
      %1246 = vrot.lane.b32.xlu0 %v490, 32
      %v1247 = vpop.permute.xlu0 %1246
      %1248 = vrot.lane.b32.xlu0 %v493, 32
      %v1249 = vpop.permute.xlu0 %1248
      %1250 = vrot.lane.b32.xlu0 %v495, 32
      %v1251 = vpop.permute.xlu0 %1250
      %1252 = vrot.lane.b32.xlu0 %v498, 32
      %v1253 = vpop.permute.xlu0 %1252
      %1254 = vrot.lane.b32.xlu0 %v500, 32
      %v1255 = vpop.permute.xlu0 %1254
      %1256 = vrot.lane.b32.xlu0 %v503, 32
      %v1257 = vpop.permute.xlu0 %1256
      %1258 = vrot.lane.b32.xlu0 %v505, 32
      %v1259 = vpop.permute.xlu0 %1258
      %1260 = vrot.lane.b32.xlu0 %v516, 32
      %v1261 = vpop.permute.xlu0 %1260
      %1262 = vrot.lane.b32.xlu0 %v518, 32
      %v1263 = vpop.permute.xlu0 %1262
      %1264 = vrot.lane.b32.xlu0 %v529, 32
      %v1265 = vpop.permute.xlu0 %1264
      %1266 = vrot.lane.b32.xlu0 %v531, 32
      %v1267 = vpop.permute.xlu0 %1266
      %vm1300 = vcmask 31744
      %v1301 = vsel %vm1300, %v242, %v533
      %v1302 = vsel %vm1300, %v243, %v535
      %v1303 = vsel %vm1300, %v245, %v537
      %v1304 = vsel %vm1300, %v246, %v539
      %v1305 = vsel %vm1300, %v248, %v541
      %v1306 = vsel %vm1300, %v249, %v543
      %v1307 = vsel %vm1300, %v251, %v545
      %v1308 = vsel %vm1300, %v252, %v547
      %v1309 = vsel %vm1300, %v254, %v549
      %v1310 = vsel %vm1300, %v255, %v551
      %v1311 = vsel %vm1300, %v257, %v553
      %v1312 = vsel %vm1300, %v258, %v555
      %v1313 = vsel %vm1300, %v260, %v557
      %v1314 = vsel %vm1300, %v261, %v559
      %v1315 = vsel %vm1300, %v263, %v561
      %v1316 = vsel %vm1300, %v264, %v563
      %v1317 = vsel %vm1300, %v266, %v565
      %v1318 = vsel %vm1300, %v267, %v567
      %v1319 = vsel %vm1300, %v269, %v569
      %v1320 = vsel %vm1300, %v270, %v571
      %v1321 = vsel %vm1300, %v272, %v573
      %v1322 = vsel %vm1300, %v273, %v575
      %v1323 = vsel %vm1300, %v275, %v577
      %v1324 = vsel %vm1300, %v276, %v579
      %v1325 = vsel %vm1300, %v278, %v581
      %v1326 = vsel %vm1300, %v279, %v583
      %v1327 = vsel %vm1300, %v281, %v585
      %v1328 = vsel %vm1300, %v282, %v587
      %v1329 = vsel %vm1300, %v284, %v589
      %v1330 = vsel %vm1300, %v285, %v591
      %v1331 = vsel %vm1300, %v287, %v593
      %v1332 = vsel %vm1300, %v288, %v595
      %vm1333 = vcmask 64512
      %v1334 = vsel %vm1333, %v1301, %v629
      %v1335 = vsel %vm1333, %v1302, %v631
      %v1336 = vsel %vm1333, %v1303, %v633
      %v1337 = vsel %vm1333, %v1304, %v635
      %v1338 = vsel %vm1333, %v1305, %v637
      %v1339 = vsel %vm1333, %v1306, %v639
      %v1340 = vsel %vm1333, %v1307, %v641
      %v1341 = vsel %vm1333, %v1308, %v643
      %v1342 = vsel %vm1333, %v1309, %v645
      %v1343 = vsel %vm1333, %v1310, %v647
      %v1344 = vsel %vm1333, %v1311, %v649
      %v1345 = vsel %vm1333, %v1312, %v651
      %v1346 = vsel %vm1333, %v1313, %v653
      %v1347 = vsel %vm1333, %v1314, %v655
      %v1348 = vsel %vm1333, %v1315, %v657
      %v1349 = vsel %vm1333, %v1316, %v659
      %v1350 = vsel %vm1333, %v1317, %v661
      %v1351 = vsel %vm1333, %v1318, %v663
      %v1352 = vsel %vm1333, %v1319, %v665
      %v1353 = vsel %vm1333, %v1320, %v667
      %v1354 = vsel %vm1333, %v1321, %v669
      %v1355 = vsel %vm1333, %v1322, %v671
      %v1356 = vsel %vm1333, %v1323, %v673
      %v1357 = vsel %vm1333, %v1324, %v675
      %v1358 = vsel %vm1333, %v1325, %v677
      %v1359 = vsel %vm1333, %v1326, %v679
      %v1360 = vsel %vm1333, %v1327, %v681
      %v1361 = vsel %vm1333, %v1328, %v683
      %v1362 = vsel %vm1333, %v1329, %v685
      %v1363 = vsel %vm1333, %v1330, %v687
      %v1364 = vsel %vm1333, %v1331, %v689
      %v1365 = vsel %vm1333, %v1332, %v691
      %vm1366 = vcmask 97280
      %v1367 = vsel %vm1366, %v1334, %v725
      %v1368 = vsel %vm1366, %v1335, %v727
      %v1369 = vsel %vm1366, %v1336, %v729
      %v1370 = vsel %vm1366, %v1337, %v731
      %v1371 = vsel %vm1366, %v1338, %v733
      %v1372 = vsel %vm1366, %v1339, %v735
      %v1373 = vsel %vm1366, %v1340, %v737
      %v1374 = vsel %vm1366, %v1341, %v739
      %v1375 = vsel %vm1366, %v1342, %v741
      %v1376 = vsel %vm1366, %v1343, %v743
      %v1377 = vsel %vm1366, %v1344, %v745
      %v1378 = vsel %vm1366, %v1345, %v747
      %v1379 = vsel %vm1366, %v1346, %v749
      %v1380 = vsel %vm1366, %v1347, %v751
      %v1381 = vsel %vm1366, %v1348, %v753
      %v1382 = vsel %vm1366, %v1349, %v755
      %v1383 = vsel %vm1366, %v1350, %v757
      %v1384 = vsel %vm1366, %v1351, %v759
      %v1385 = vsel %vm1366, %v1352, %v761
      %v1386 = vsel %vm1366, %v1353, %v763
      %v1387 = vsel %vm1366, %v1354, %v765
      %v1388 = vsel %vm1366, %v1355, %v767
      %v1389 = vsel %vm1366, %v1356, %v769
      %v1390 = vsel %vm1366, %v1357, %v771
      %v1391 = vsel %vm1366, %v1358, %v773
      %v1392 = vsel %vm1366, %v1359, %v775
      %v1393 = vsel %vm1366, %v1360, %v777
      %v1394 = vsel %vm1366, %v1361, %v779
      %v1395 = vsel %vm1366, %v1362, %v781
      %v1396 = vsel %vm1366, %v1363, %v783
      %v1397 = vsel %vm1366, %v1364, %v785
      %v1398 = vsel %vm1366, %v1365, %v787
      %vm1399 = vcmask 130048
      %v1400 = vsel %vm1399, %v1367, %v821
      %v1401 = vsel %vm1399, %v1368, %v823
      %v1402 = vsel %vm1399, %v1369, %v825
      %v1403 = vsel %vm1399, %v1370, %v827
      %v1404 = vsel %vm1399, %v1371, %v829
      %v1405 = vsel %vm1399, %v1372, %v831
      %v1406 = vsel %vm1399, %v1373, %v833
      %v1407 = vsel %vm1399, %v1374, %v835
      %v1408 = vsel %vm1399, %v1375, %v837
      %v1409 = vsel %vm1399, %v1376, %v839
      %v1410 = vsel %vm1399, %v1377, %v841
      %v1411 = vsel %vm1399, %v1378, %v843
      %v1412 = vsel %vm1399, %v1379, %v845
      %v1413 = vsel %vm1399, %v1380, %v847
      %v1414 = vsel %vm1399, %v1381, %v849
      %v1415 = vsel %vm1399, %v1382, %v851
      %v1416 = vsel %vm1399, %v1383, %v853
      %v1417 = vsel %vm1399, %v1384, %v855
      %v1418 = vsel %vm1399, %v1385, %v857
      %v1419 = vsel %vm1399, %v1386, %v859
      %v1420 = vsel %vm1399, %v1387, %v861
      %v1421 = vsel %vm1399, %v1388, %v863
      %v1422 = vsel %vm1399, %v1389, %v865
      %v1423 = vsel %vm1399, %v1390, %v867
      %v1424 = vsel %vm1399, %v1391, %v869
      %v1425 = vsel %vm1399, %v1392, %v871
      %v1426 = vsel %vm1399, %v1393, %v873
      %v1427 = vsel %vm1399, %v1394, %v875
      %v1428 = vsel %vm1399, %v1395, %v877
      %v1429 = vsel %vm1399, %v1396, %v879
      %v1430 = vsel %vm1399, %v1397, %v881
      %v1431 = vsel %vm1399, %v1398, %v883
      %vm1432 = vcmask 162816
      %v1433 = vsel %vm1432, %v1400, %v917
      %v1434 = vsel %vm1432, %v1401, %v919
      %v1435 = vsel %vm1432, %v1402, %v921
      %v1436 = vsel %vm1432, %v1403, %v923
      %v1437 = vsel %vm1432, %v1404, %v925
      %v1438 = vsel %vm1432, %v1405, %v927
      %v1439 = vsel %vm1432, %v1406, %v929
      %v1440 = vsel %vm1432, %v1407, %v931
      %v1441 = vsel %vm1432, %v1408, %v933
      %v1442 = vsel %vm1432, %v1409, %v935
      %v1443 = vsel %vm1432, %v1410, %v937
      %v1444 = vsel %vm1432, %v1411, %v939
      %v1445 = vsel %vm1432, %v1412, %v941
      %v1446 = vsel %vm1432, %v1413, %v943
      %v1447 = vsel %vm1432, %v1414, %v945
      %v1448 = vsel %vm1432, %v1415, %v947
      %v1449 = vsel %vm1432, %v1416, %v949
      %v1450 = vsel %vm1432, %v1417, %v951
      %v1451 = vsel %vm1432, %v1418, %v953
      %v1452 = vsel %vm1432, %v1419, %v955
      %v1453 = vsel %vm1432, %v1420, %v957
      %v1454 = vsel %vm1432, %v1421, %v959
      %v1455 = vsel %vm1432, %v1422, %v961
      %v1456 = vsel %vm1432, %v1423, %v963
      %v1457 = vsel %vm1432, %v1424, %v965
      %v1458 = vsel %vm1432, %v1425, %v967
      %v1459 = vsel %vm1432, %v1426, %v969
      %v1460 = vsel %vm1432, %v1427, %v971
      %v1461 = vsel %vm1432, %v1428, %v973
      %v1462 = vsel %vm1432, %v1429, %v975
      %v1463 = vsel %vm1432, %v1430, %v977
      %v1464 = vsel %vm1432, %v1431, %v979
      %vm1465 = vcmask 195584
      %v1466 = vsel %vm1465, %v1433, %v1013
      %v1467 = vsel %vm1465, %v1434, %v1015
      %v1468 = vsel %vm1465, %v1435, %v1017
      %v1469 = vsel %vm1465, %v1436, %v1019
      %v1470 = vsel %vm1465, %v1437, %v1021
      %v1471 = vsel %vm1465, %v1438, %v1023
      %v1472 = vsel %vm1465, %v1439, %v1025
      %v1473 = vsel %vm1465, %v1440, %v1027
      %v1474 = vsel %vm1465, %v1441, %v1029
      %v1475 = vsel %vm1465, %v1442, %v1031
      %v1476 = vsel %vm1465, %v1443, %v1033
      %v1477 = vsel %vm1465, %v1444, %v1035
      %v1478 = vsel %vm1465, %v1445, %v1037
      %v1479 = vsel %vm1465, %v1446, %v1039
      %v1480 = vsel %vm1465, %v1447, %v1041
      %v1481 = vsel %vm1465, %v1448, %v1043
      %v1482 = vsel %vm1465, %v1449, %v1045
      %v1483 = vsel %vm1465, %v1450, %v1047
      %v1484 = vsel %vm1465, %v1451, %v1049
      %v1485 = vsel %vm1465, %v1452, %v1051
      %v1486 = vsel %vm1465, %v1453, %v1053
      %v1487 = vsel %vm1465, %v1454, %v1055
      %v1488 = vsel %vm1465, %v1455, %v1057
      %v1489 = vsel %vm1465, %v1456, %v1059
      %v1490 = vsel %vm1465, %v1457, %v1061
      %v1491 = vsel %vm1465, %v1458, %v1063
      %v1492 = vsel %vm1465, %v1459, %v1065
      %v1493 = vsel %vm1465, %v1460, %v1067
      %v1494 = vsel %vm1465, %v1461, %v1069
      %v1495 = vsel %vm1465, %v1462, %v1071
      %v1496 = vsel %vm1465, %v1463, %v1073
      %v1497 = vsel %vm1465, %v1464, %v1075
      %vm1498 = vcmask 228352
      %v1499 = vsel %vm1498, %v1466, %v1109
      %v1500 = vsel %vm1498, %v1467, %v1111
      %v1501 = vsel %vm1498, %v1468, %v1113
      %v1502 = vsel %vm1498, %v1469, %v1115
      %v1503 = vsel %vm1498, %v1470, %v1117
      %v1504 = vsel %vm1498, %v1471, %v1119
      %v1505 = vsel %vm1498, %v1472, %v1121
      %v1506 = vsel %vm1498, %v1473, %v1123
      %v1507 = vsel %vm1498, %v1474, %v1125
      %v1508 = vsel %vm1498, %v1475, %v1127
      %v1509 = vsel %vm1498, %v1476, %v1129
      %v1510 = vsel %vm1498, %v1477, %v1131
      %v1511 = vsel %vm1498, %v1478, %v1133
      %v1512 = vsel %vm1498, %v1479, %v1135
      %v1513 = vsel %vm1498, %v1480, %v1137
      %v1514 = vsel %vm1498, %v1481, %v1139
      %v1515 = vsel %vm1498, %v1482, %v1141
      %v1516 = vsel %vm1498, %v1483, %v1143
      %v1517 = vsel %vm1498, %v1484, %v1145
      %v1518 = vsel %vm1498, %v1485, %v1147
      %v1519 = vsel %vm1498, %v1486, %v1149
      %v1520 = vsel %vm1498, %v1487, %v1151
      %v1521 = vsel %vm1498, %v1488, %v1153
      %v1522 = vsel %vm1498, %v1489, %v1155
      %v1523 = vsel %vm1498, %v1490, %v1157
      %v1524 = vsel %vm1498, %v1491, %v1159
      %v1525 = vsel %vm1498, %v1492, %v1161
      %v1526 = vsel %vm1498, %v1493, %v1163
      %v1527 = vsel %vm1498, %v1494, %v1165
      %v1528 = vsel %vm1498, %v1495, %v1167
      %v1529 = vsel %vm1498, %v1496, %v1169
      %v1530 = vsel %vm1498, %v1497, %v1171
      %vm1531 = vcmask 261120
      %v1532 = vsel %vm1531, %v1499, %v1205
      %v1533 = vsel %vm1531, %v1500, %v1207
      %v1534 = vsel %vm1531, %v1501, %v1209
      %v1535 = vsel %vm1531, %v1502, %v1211
      %v1536 = vsel %vm1531, %v1503, %v1213
      %v1537 = vsel %vm1531, %v1504, %v1215
      %v1538 = vsel %vm1531, %v1505, %v1217
      %v1539 = vsel %vm1531, %v1506, %v1219
      %v1540 = vsel %vm1531, %v1507, %v1221
      %v1541 = vsel %vm1531, %v1508, %v1223
      %v1542 = vsel %vm1531, %v1509, %v1225
      %v1543 = vsel %vm1531, %v1510, %v1227
      %v1544 = vsel %vm1531, %v1511, %v1229
      %v1545 = vsel %vm1531, %v1512, %v1231
      %v1546 = vsel %vm1531, %v1513, %v1233
      %v1547 = vsel %vm1531, %v1514, %v1235
      %v1548 = vsel %vm1531, %v1515, %v1237
      %v1549 = vsel %vm1531, %v1516, %v1239
      %v1550 = vsel %vm1531, %v1517, %v1241
      %v1551 = vsel %vm1531, %v1518, %v1243
      %v1552 = vsel %vm1531, %v1519, %v1245
      %v1553 = vsel %vm1531, %v1520, %v1247
      %v1554 = vsel %vm1531, %v1521, %v1249
      %v1555 = vsel %vm1531, %v1522, %v1251
      %v1556 = vsel %vm1531, %v1523, %v1253
      %v1557 = vsel %vm1531, %v1524, %v1255
      %v1558 = vsel %vm1531, %v1525, %v1257
      %v1559 = vsel %vm1531, %v1526, %v1259
      %v1560 = vsel %vm1531, %v1527, %v1261
      %v1561 = vsel %vm1531, %v1528, %v1263
      %v1562 = vsel %vm1531, %v1529, %v1265
      %v1563 = vsel %vm1531, %v1530, %v1267
      %v1564 = vld [vmem:[%s1] sm:$0xff]
      %v1565 = vld [vmem:[%s1 + $0x8] sm:$0xff]
      %v1566 = vld [vmem:[%s1 + $0x10] sm:$0xff]
      %v1567 = vld [vmem:[%s1 + $0x18] sm:$0xff]
      %v1568 = vld [vmem:[%s1 + $0x20] sm:$0xf]
      %v1569 = vld [vmem:[%s2] sm:$0x1]
      %v1571 = vlaneseq
      %v1572 = vshrl.u32 %v1571, 7
      %v1573 = vsub.s32 0, %v1572
      %v1574 = vrot.slane %v1569, %v1573
      %vm1576 = vcmask 293888
      %v1578 = vsel %vm1576, %v1532, 0
      %v1581 = vsel %vm1576, %v1533, 0
      %v1584 = vsel %vm1576, %v1534, 0
      %v1587 = vsel %vm1576, %v1535, 0
      %v1590 = vsel %vm1576, %v1536, 0
      %v1593 = vsel %vm1576, %v1537, 0
      %v1596 = vsel %vm1576, %v1538, 0
      %v1599 = vsel %vm1576, %v1539, 0
      %v1602 = vsel %vm1576, %v1540, 0
      %v1605 = vsel %vm1576, %v1541, 0
      %v1608 = vsel %vm1576, %v1542, 0
      %v1611 = vsel %vm1576, %v1543, 0
      %v1614 = vsel %vm1576, %v1544, 0
      %v1617 = vsel %vm1576, %v1545, 0
      %v1620 = vsel %vm1576, %v1546, 0
      %v1623 = vsel %vm1576, %v1547, 0
      %v1626 = vsel %vm1576, %v1548, 0
      %v1629 = vsel %vm1576, %v1549, 0
      %v1632 = vsel %vm1576, %v1550, 0
      %v1635 = vsel %vm1576, %v1551, 0
      %v1638 = vsel %vm1576, %v1552, 0
      %v1641 = vsel %vm1576, %v1553, 0
      %v1644 = vsel %vm1576, %v1554, 0
      %v1647 = vsel %vm1576, %v1555, 0
      %v1650 = vsel %vm1576, %v1556, 0
      %v1653 = vsel %vm1576, %v1557, 0
      %v1656 = vsel %vm1576, %v1558, 0
      %v1659 = vsel %vm1576, %v1559, 0
      %v1662 = vsel %vm1576, %v1560, 0
      %v1665 = vsel %vm1576, %v1561, 0
      %v1668 = vsel %vm1576, %v1562, 0
      %v1671 = vsel %vm1576, %v1563, 0
      %vm1673 = vcmask 1043456
      %v1675 = vsel %vm1673, %v1568, 0
      %1677 = vmatprep.subr.mxu0 0.0
      %1678 = vmatpush1.msra.mxu0 %v1564
      %1679 = vmatprep.subr.mxu0 0.0
      %1680 = vmatpush1.msra.mxu0 %v1565
      %1681 = vmatprep.subr.mxu0 0.0
      %1682 = vmatpush1.msra.mxu0 %v1566
      %1683 = vmatprep.subr.mxu0 0.0
      %1684 = vmatpush1.msra.mxu0 %v1567
      %1685 = vmatprep.subr.mxu0 0.0
      %1686 = vmatpush1.msra.mxu0 %v1675
      %1687 = vmatprep.subr.mxu0 0.0
      %1688 = vmatpush1.msra.mxu0 0.0
      %1689 = vmatprep.subr.mxu0 0.0
      %1690 = vmatpush1.msra.mxu0 0.0
      %1691 = vmatprep.subr.mxu0 0.0
      %1692 = vmatpush1.msra.mxu0 0.0
      %1693 = vmatprep.subr.mxu0 0.0
      %1694 = vmatpush1.msra.mxu0 0.0
      %1695 = vmatprep.subr.mxu0 0.0
      %1696 = vmatpush1.msra.mxu0 0.0
      %1697 = vmatprep.subr.mxu0 0.0
      %1698 = vmatpush1.msra.mxu0 0.0
      %1699 = vmatprep.subr.mxu0 0.0
      %1700 = vmatpush1.msra.mxu0 0.0
      %1701 = vmatprep.subr.mxu0 0.0
      %1702 = vmatpush1.msra.mxu0 0.0
      %1703 = vmatprep.subr.mxu0 0.0
      %1704 = vmatpush1.msra.mxu0 0.0
      %1705 = vmatprep.subr.mxu0 0.0
      %1706 = vmatpush1.msra.mxu0 0.0
      %1707 = vmatprep.subr.mxu0 0.0
      %1708 = vmatpush1.msra.mxu0 0.0
      %1709 = vmatprep.subr.mxu0 0.0
      %1710 = vmatpush1.msra.mxu0 0.0
      %1711 = vmatprep.subr.mxu0 0.0
      %1712 = vmatpush1.msra.mxu0 0.0
      %1713 = vmatprep.subr.mxu0 0.0
      %1714 = vmatpush1.msra.mxu0 0.0
      %1715 = vmatprep.subr.mxu0 0.0
      %1716 = vmatpush1.msra.mxu0 0.0
      %1717 = vmatprep.subr.mxu0 0.0
      %1718 = vmatpush1.msra.mxu0 0.0
      %1719 = vmatprep.subr.mxu0 0.0
      %1720 = vmatpush1.msra.mxu0 0.0
      %1721 = vmatprep.subr.mxu0 0.0
      %1722 = vmatpush1.msra.mxu0 0.0
      %1723 = vmatprep.subr.mxu0 0.0
      %1724 = vmatpush1.msra.mxu0 0.0
      %1725 = vmatprep.subr.mxu0 0.0
      %1726 = vmatpush1.msra.mxu0 0.0
      %1727 = vmatprep.subr.mxu0 0.0
      %1728 = vmatpush1.msra.mxu0 0.0
      %1729 = vmatprep.subr.mxu0 0.0
      %1730 = vmatpush1.msra.mxu0 0.0
      %1731 = vmatprep.subr.mxu0 0.0
      %1732 = vmatpush1.msra.mxu0 0.0
      %1733 = vmatprep.subr.mxu0 0.0
      %1734 = vmatpush1.msra.mxu0 0.0
      %1735 = vmatprep.subr.mxu0 0.0
      %1736 = vmatpush1.msra.mxu0 0.0
      %1737 = vmatprep.subr.mxu0 0.0
      %1738 = vmatpush1.msra.mxu0 0.0
      %1739 = vmatprep.subr.mxu0 0.0
      %1740 = vmatpush1.msra.mxu0 0.0
      %1741 = vmatprep.mubr.f32.mxu0 0.0
      %1742 = vmatmul.mubr.f32.gmra.mrb[0].mxu0 %v1578
      %v1743 = vpop.f32.mrb[0].mxu0
      %v1744 = vadd.f32 %v1574, %v1743
      %v1745 = vpop.f32.mrb[0].mxu0
      %1746 = vmatprep.mubr.f32.mxu0 0.0
      %1747 = vmatmul.mubr.f32.gmra.mrb[0].mxu0 %v1581
      %v1748 = vpop.f32.mrb[0].mxu0
      %v1749 = vadd.f32 %v1574, %v1748
      %v1750 = vpop.f32.mrb[0].mxu0
      %1751 = vmatprep.mubr.f32.mxu0 0.0
      %1752 = vmatmul.mubr.f32.gmra.mrb[0].mxu0 %v1584
      %v1753 = vpop.f32.mrb[0].mxu0
      %v1754 = vadd.f32 %v1574, %v1753
      %v1755 = vpop.f32.mrb[0].mxu0
      %1756 = vmatprep.mubr.f32.mxu0 0.0
      %1757 = vmatmul.mubr.f32.gmra.mrb[0].mxu0 %v1587
      %v1758 = vpop.f32.mrb[0].mxu0
      %v1759 = vadd.f32 %v1574, %v1758
      %v1760 = vpop.f32.mrb[0].mxu0
      %1761 = vmatprep.mubr.f32.mxu0 0.0
      %1762 = vmatmul.mubr.f32.gmra.mrb[0].mxu0 %v1590
      %v1763 = vpop.f32.mrb[0].mxu0
      %v1764 = vadd.f32 %v1574, %v1763
      %v1765 = vpop.f32.mrb[0].mxu0
      %1766 = vmatprep.mubr.f32.mxu0 0.0
      %1767 = vmatmul.mubr.f32.gmra.mrb[0].mxu0 %v1593
      %v1768 = vpop.f32.mrb[0].mxu0
      %v1769 = vadd.f32 %v1574, %v1768
      %v1770 = vpop.f32.mrb[0].mxu0
      %1771 = vmatprep.mubr.f32.mxu0 0.0
      %1772 = vmatmul.mubr.f32.gmra.mrb[0].mxu0 %v1596
      %v1773 = vpop.f32.mrb[0].mxu0
      %v1774 = vadd.f32 %v1574, %v1773
      %v1775 = vpop.f32.mrb[0].mxu0
      %1776 = vmatprep.mubr.f32.mxu0 0.0
      %1777 = vmatmul.mubr.f32.gmra.mrb[0].mxu0 %v1599
      %v1778 = vpop.f32.mrb[0].mxu0
      %v1779 = vadd.f32 %v1574, %v1778
      %v1780 = vpop.f32.mrb[0].mxu0
      %1781 = vmatprep.mubr.f32.mxu0 0.0
      %1782 = vmatmul.mubr.f32.gmra.mrb[0].mxu0 %v1602
      %v1783 = vpop.f32.mrb[0].mxu0
      %v1784 = vadd.f32 %v1574, %v1783
      %v1785 = vpop.f32.mrb[0].mxu0
      %1786 = vmatprep.mubr.f32.mxu0 0.0
      %1787 = vmatmul.mubr.f32.gmra.mrb[0].mxu0 %v1605
      %v1788 = vpop.f32.mrb[0].mxu0
      %v1789 = vadd.f32 %v1574, %v1788
      %v1790 = vpop.f32.mrb[0].mxu0
      %1791 = vmatprep.mubr.f32.mxu0 0.0
      %1792 = vmatmul.mubr.f32.gmra.mrb[0].mxu0 %v1608
      %v1793 = vpop.f32.mrb[0].mxu0
      %v1794 = vadd.f32 %v1574, %v1793
      %v1795 = vpop.f32.mrb[0].mxu0
      %1796 = vmatprep.mubr.f32.mxu0 0.0
      %1797 = vmatmul.mubr.f32.gmra.mrb[0].mxu0 %v1611
      %v1798 = vpop.f32.mrb[0].mxu0
      %v1799 = vadd.f32 %v1574, %v1798
      %v1800 = vpop.f32.mrb[0].mxu0
      %1801 = vmatprep.mubr.f32.mxu0 0.0
      %1802 = vmatmul.mubr.f32.gmra.mrb[0].mxu0 %v1614
      %v1803 = vpop.f32.mrb[0].mxu0
      %v1804 = vadd.f32 %v1574, %v1803
      %v1805 = vpop.f32.mrb[0].mxu0
      %1806 = vmatprep.mubr.f32.mxu0 0.0
      %1807 = vmatmul.mubr.f32.gmra.mrb[0].mxu0 %v1617
      %v1808 = vpop.f32.mrb[0].mxu0
      %v1809 = vadd.f32 %v1574, %v1808
      %v1810 = vpop.f32.mrb[0].mxu0
      %1811 = vmatprep.mubr.f32.mxu0 0.0
      %1812 = vmatmul.mubr.f32.gmra.mrb[0].mxu0 %v1620
      %v1813 = vpop.f32.mrb[0].mxu0
      %v1814 = vadd.f32 %v1574, %v1813
      %v1815 = vpop.f32.mrb[0].mxu0
      %1816 = vmatprep.mubr.f32.mxu0 0.0
      %1817 = vmatmul.mubr.f32.gmra.mrb[0].mxu0 %v1623
      %v1818 = vpop.f32.mrb[0].mxu0
      %v1819 = vadd.f32 %v1574, %v1818
      %v1820 = vpop.f32.mrb[0].mxu0
      %1821 = vmatprep.mubr.f32.mxu0 0.0
      %1822 = vmatmul.mubr.f32.gmra.mrb[0].mxu0 %v1626
      %v1823 = vpop.f32.mrb[0].mxu0
      %v1824 = vadd.f32 %v1574, %v1823
      %v1825 = vpop.f32.mrb[0].mxu0
      %1826 = vmatprep.mubr.f32.mxu0 0.0
      %1827 = vmatmul.mubr.f32.gmra.mrb[0].mxu0 %v1629
      %v1828 = vpop.f32.mrb[0].mxu0
      %v1829 = vadd.f32 %v1574, %v1828
      %v1830 = vpop.f32.mrb[0].mxu0
      %1831 = vmatprep.mubr.f32.mxu0 0.0
      %1832 = vmatmul.mubr.f32.gmra.mrb[0].mxu0 %v1632
      %v1833 = vpop.f32.mrb[0].mxu0
      %v1834 = vadd.f32 %v1574, %v1833
      %v1835 = vpop.f32.mrb[0].mxu0
      %1836 = vmatprep.mubr.f32.mxu0 0.0
      %1837 = vmatmul.mubr.f32.gmra.mrb[0].mxu0 %v1635
      %v1838 = vpop.f32.mrb[0].mxu0
      %v1839 = vadd.f32 %v1574, %v1838
      %v1840 = vpop.f32.mrb[0].mxu0
      %1841 = vmatprep.mubr.f32.mxu0 0.0
      %1842 = vmatmul.mubr.f32.gmra.mrb[0].mxu0 %v1638
      %v1843 = vpop.f32.mrb[0].mxu0
      %v1844 = vadd.f32 %v1574, %v1843
      %v1845 = vpop.f32.mrb[0].mxu0
      %1846 = vmatprep.mubr.f32.mxu0 0.0
      %1847 = vmatmul.mubr.f32.gmra.mrb[0].mxu0 %v1641
      %v1848 = vpop.f32.mrb[0].mxu0
      %v1849 = vadd.f32 %v1574, %v1848
      %v1850 = vpop.f32.mrb[0].mxu0
      %1851 = vmatprep.mubr.f32.mxu0 0.0
      %1852 = vmatmul.mubr.f32.gmra.mrb[0].mxu0 %v1644
      %v1853 = vpop.f32.mrb[0].mxu0
      %v1854 = vadd.f32 %v1574, %v1853
      %v1855 = vpop.f32.mrb[0].mxu0
      %1856 = vmatprep.mubr.f32.mxu0 0.0
      %1857 = vmatmul.mubr.f32.gmra.mrb[0].mxu0 %v1647
      %v1858 = vpop.f32.mrb[0].mxu0
      %v1859 = vadd.f32 %v1574, %v1858
      %v1860 = vpop.f32.mrb[0].mxu0
      %1861 = vmatprep.mubr.f32.mxu0 0.0
      %1862 = vmatmul.mubr.f32.gmra.mrb[0].mxu0 %v1650
      %v1863 = vpop.f32.mrb[0].mxu0
      %v1864 = vadd.f32 %v1574, %v1863
      %v1865 = vpop.f32.mrb[0].mxu0
      %1866 = vmatprep.mubr.f32.mxu0 0.0
      %1867 = vmatmul.mubr.f32.gmra.mrb[0].mxu0 %v1653
      %v1868 = vpop.f32.mrb[0].mxu0
      %v1869 = vadd.f32 %v1574, %v1868
      %v1870 = vpop.f32.mrb[0].mxu0
      %1871 = vmatprep.mubr.f32.mxu0 0.0
      %1872 = vmatmul.mubr.f32.gmra.mrb[0].mxu0 %v1656
      %v1873 = vpop.f32.mrb[0].mxu0
      %v1874 = vadd.f32 %v1574, %v1873
      %v1875 = vpop.f32.mrb[0].mxu0
      %1876 = vmatprep.mubr.f32.mxu0 0.0
      %1877 = vmatmul.mubr.f32.gmra.mrb[0].mxu0 %v1659
      %v1878 = vpop.f32.mrb[0].mxu0
      %v1879 = vadd.f32 %v1574, %v1878
      %v1880 = vpop.f32.mrb[0].mxu0
      %1881 = vmatprep.mubr.f32.mxu0 0.0
      %1882 = vmatmul.mubr.f32.gmra.mrb[0].mxu0 %v1662
      %v1883 = vpop.f32.mrb[0].mxu0
      %v1884 = vadd.f32 %v1574, %v1883
      %v1885 = vpop.f32.mrb[0].mxu0
      %1886 = vmatprep.mubr.f32.mxu0 0.0
      %1887 = vmatmul.mubr.f32.gmra.mrb[0].mxu0 %v1665
      %v1888 = vpop.f32.mrb[0].mxu0
      %v1889 = vadd.f32 %v1574, %v1888
      %v1890 = vpop.f32.mrb[0].mxu0
      %1891 = vmatprep.mubr.f32.mxu0 0.0
      %1892 = vmatmul.mubr.f32.gmra.mrb[0].mxu0 %v1668
      %v1893 = vpop.f32.mrb[0].mxu0
      %v1894 = vadd.f32 %v1574, %v1893
      %v1895 = vpop.f32.mrb[0].mxu0
      %1896 = vmatprep.mubr.f32.mxu0 0.0
      %1897 = vmatmul.mubr.f32.gmra.mrb[0].mxu0 %v1671
      %v1898 = vpop.f32.mrb[0].mxu0
      %v1899 = vadd.f32 %v1574, %v1898
      %v1900 = vpop.f32.mrb[0].mxu0
      %1901 = vdwg.mxu0
      %1902 = vst.msk [vmem:[%s235] sm:$0xff] %vm1333, %v1744
      %1903 = vst.msk [vmem:[%s235 + $0x8] sm:$0xff] %vm1333, %v1749
      %1904 = vst.msk [vmem:[%s235 + $0x10] sm:$0xff] %vm1333, %v1754
      %1905 = vst.msk [vmem:[%s235 + $0x18] sm:$0xff] %vm1333, %v1759
      %1906 = vst.msk [vmem:[%s235 + $0x20] sm:$0xff] %vm1333, %v1764
      %1907 = vst.msk [vmem:[%s235 + $0x28] sm:$0xff] %vm1333, %v1769
      %1908 = vst.msk [vmem:[%s235 + $0x30] sm:$0xff] %vm1333, %v1774
      %1909 = vst.msk [vmem:[%s235 + $0x38] sm:$0xff] %vm1333, %v1779
      %1910 = vst.msk [vmem:[%s235 + $0x40] sm:$0xff] %vm1333, %v1784
      %1911 = vst.msk [vmem:[%s235 + $0x48] sm:$0xff] %vm1333, %v1789
      %1912 = vst.msk [vmem:[%s235 + $0x50] sm:$0xff] %vm1333, %v1794
      %1913 = vst.msk [vmem:[%s235 + $0x58] sm:$0xff] %vm1333, %v1799
      %1914 = vst.msk [vmem:[%s235 + $0x60] sm:$0xff] %vm1333, %v1804
      %1915 = vst.msk [vmem:[%s235 + $0x68] sm:$0xff] %vm1333, %v1809
      %1916 = vst.msk [vmem:[%s235 + $0x70] sm:$0xff] %vm1333, %v1814
      %1917 = vst.msk [vmem:[%s235 + $0x78] sm:$0xff] %vm1333, %v1819
      %1918 = vst.msk [vmem:[%s235 + $0x80] sm:$0xff] %vm1333, %v1824
      %1919 = vst.msk [vmem:[%s235 + $0x88] sm:$0xff] %vm1333, %v1829
      %1920 = vst.msk [vmem:[%s235 + $0x90] sm:$0xff] %vm1333, %v1834
      %1921 = vst.msk [vmem:[%s235 + $0x98] sm:$0xff] %vm1333, %v1839
      %1922 = vst.msk [vmem:[%s235 + $0xa0] sm:$0xff] %vm1333, %v1844
      %1923 = vst.msk [vmem:[%s235 + $0xa8] sm:$0xff] %vm1333, %v1849
      %1924 = vst.msk [vmem:[%s235 + $0xb0] sm:$0xff] %vm1333, %v1854
      %1925 = vst.msk [vmem:[%s235 + $0xb8] sm:$0xff] %vm1333, %v1859
      %1926 = vst.msk [vmem:[%s235 + $0xc0] sm:$0xff] %vm1333, %v1864
      %1927 = vst.msk [vmem:[%s235 + $0xc8] sm:$0xff] %vm1333, %v1869
      %1928 = vst.msk [vmem:[%s235 + $0xd0] sm:$0xff] %vm1333, %v1874
      %1929 = vst.msk [vmem:[%s235 + $0xd8] sm:$0xff] %vm1333, %v1879
      %1930 = vst.msk [vmem:[%s235 + $0xe0] sm:$0xff] %vm1333, %v1884
      %1931 = vst.msk [vmem:[%s235 + $0xe8] sm:$0xff] %vm1333, %v1889
      %1932 = vst.msk [vmem:[%s235 + $0xf0] sm:$0xff] %vm1333, %v1894
      %1933 = vst.msk [vmem:[%s235 + $0xf8] sm:$0xff] %vm1333, %v1899
      %v1934 = vsel %vm1333, %v1744, 0.0
      %v1935 = vsel %vm1333, %v1749, 0.0
      %v1936 = vadd.f32 %v1934, %v1935
      %v1937 = vsel %vm1333, %v1754, 0.0
      %v1938 = vadd.f32 %v1936, %v1937
      %v1939 = vsel %vm1333, %v1759, 0.0
      %v1940 = vadd.f32 %v1938, %v1939
      %v1941 = vsel %vm1333, %v1764, 0.0
      %v1942 = vadd.f32 %v1940, %v1941
      %v1943 = vsel %vm1333, %v1769, 0.0
      %v1944 = vadd.f32 %v1942, %v1943
      %v1945 = vsel %vm1333, %v1774, 0.0
      %v1946 = vadd.f32 %v1944, %v1945
      %v1947 = vsel %vm1333, %v1779, 0.0
      %v1948 = vadd.f32 %v1946, %v1947
      %v1949 = vsel %vm1333, %v1784, 0.0
      %v1950 = vadd.f32 %v1948, %v1949
      %v1951 = vsel %vm1333, %v1789, 0.0
      %v1952 = vadd.f32 %v1950, %v1951
      %v1953 = vsel %vm1333, %v1794, 0.0
      %v1954 = vadd.f32 %v1952, %v1953
      %v1955 = vsel %vm1333, %v1799, 0.0
      %v1956 = vadd.f32 %v1954, %v1955
      %v1957 = vsel %vm1333, %v1804, 0.0
      %v1958 = vadd.f32 %v1956, %v1957
      %v1959 = vsel %vm1333, %v1809, 0.0
      %v1960 = vadd.f32 %v1958, %v1959
      %v1961 = vsel %vm1333, %v1814, 0.0
      %v1962 = vadd.f32 %v1960, %v1961
      %v1963 = vsel %vm1333, %v1819, 0.0
      %v1964 = vadd.f32 %v1962, %v1963
      %v1965 = vsel %vm1333, %v1824, 0.0
      %v1966 = vadd.f32 %v1964, %v1965
      %v1967 = vsel %vm1333, %v1829, 0.0
      %v1968 = vadd.f32 %v1966, %v1967
      %v1969 = vsel %vm1333, %v1834, 0.0
      %v1970 = vadd.f32 %v1968, %v1969
      %v1971 = vsel %vm1333, %v1839, 0.0
      %v1972 = vadd.f32 %v1970, %v1971
      %v1973 = vsel %vm1333, %v1844, 0.0
      %v1974 = vadd.f32 %v1972, %v1973
      %v1975 = vsel %vm1333, %v1849, 0.0
      %v1976 = vadd.f32 %v1974, %v1975
      %v1977 = vsel %vm1333, %v1854, 0.0
      %v1978 = vadd.f32 %v1976, %v1977
      %v1979 = vsel %vm1333, %v1859, 0.0
      %v1980 = vadd.f32 %v1978, %v1979
      %v1981 = vsel %vm1333, %v1864, 0.0
      %v1982 = vadd.f32 %v1980, %v1981
      %v1983 = vsel %vm1333, %v1869, 0.0
      %v1984 = vadd.f32 %v1982, %v1983
      %v1985 = vsel %vm1333, %v1874, 0.0
      %v1986 = vadd.f32 %v1984, %v1985
      %v1987 = vsel %vm1333, %v1879, 0.0
      %v1988 = vadd.f32 %v1986, %v1987
      %v1989 = vsel %vm1333, %v1884, 0.0
      %v1990 = vadd.f32 %v1988, %v1989
      %v1991 = vsel %vm1333, %v1889, 0.0
      %v1992 = vadd.f32 %v1990, %v1991
      %v1993 = vsel %vm1333, %v1894, 0.0
      %v1994 = vadd.f32 %v1992, %v1993
      %v1995 = vsel %vm1333, %v1899, 0.0
      %v1996 = vadd.f32 %v1994, %v1995
      %v1997 = vrot.slane %v1996, 4
      %v1998 = vadd.f32 %v1996, %v1997
      %v1999 = vrot.slane %v1998, 2
      %v2000 = vadd.f32 %v1998, %v1999
      %v2001 = vrot.slane %v2000, 1
      %v2002 = vadd.f32 %v2000, %v2001
      %vm2003 = vcmask 57344
      %2004 = vst.msk [vmem:[%s238] sm:$0x1] %vm2003, %v2002
      %v2005 = vmul.f32 %v1744, %v1744
      %v2006 = vmul.f32 %v1749, %v1749
      %v2007 = vmul.f32 %v1754, %v1754
      %v2008 = vmul.f32 %v1759, %v1759
      %v2009 = vmul.f32 %v1764, %v1764
      %v2010 = vmul.f32 %v1769, %v1769
      %v2011 = vmul.f32 %v1774, %v1774
      %v2012 = vmul.f32 %v1779, %v1779
      %v2013 = vmul.f32 %v1784, %v1784
      %v2014 = vmul.f32 %v1789, %v1789
      %v2015 = vmul.f32 %v1794, %v1794
      %v2016 = vmul.f32 %v1799, %v1799
      %v2017 = vmul.f32 %v1804, %v1804
      %v2018 = vmul.f32 %v1809, %v1809
      %v2019 = vmul.f32 %v1814, %v1814
      %v2020 = vmul.f32 %v1819, %v1819
      %v2021 = vmul.f32 %v1824, %v1824
      %v2022 = vmul.f32 %v1829, %v1829
      %v2023 = vmul.f32 %v1834, %v1834
      %v2024 = vmul.f32 %v1839, %v1839
      %v2025 = vmul.f32 %v1844, %v1844
      %v2026 = vmul.f32 %v1849, %v1849
      %v2027 = vmul.f32 %v1854, %v1854
      %v2028 = vmul.f32 %v1859, %v1859
      %v2029 = vmul.f32 %v1864, %v1864
      %v2030 = vmul.f32 %v1869, %v1869
      %v2031 = vmul.f32 %v1874, %v1874
      %v2032 = vmul.f32 %v1879, %v1879
      %v2033 = vmul.f32 %v1884, %v1884
      %v2034 = vmul.f32 %v1889, %v1889
      %v2035 = vmul.f32 %v1894, %v1894
      %v2036 = vmul.f32 %v1899, %v1899
      %v2037 = vsel %vm1333, %v2005, 0.0
      %v2038 = vsel %vm1333, %v2006, 0.0
      %v2039 = vadd.f32 %v2037, %v2038
      %v2040 = vsel %vm1333, %v2007, 0.0
      %v2041 = vadd.f32 %v2039, %v2040
      %v2042 = vsel %vm1333, %v2008, 0.0
      %v2043 = vadd.f32 %v2041, %v2042
      %v2044 = vsel %vm1333, %v2009, 0.0
      %v2045 = vadd.f32 %v2043, %v2044
      %v2046 = vsel %vm1333, %v2010, 0.0
      %v2047 = vadd.f32 %v2045, %v2046
      %v2048 = vsel %vm1333, %v2011, 0.0
      %v2049 = vadd.f32 %v2047, %v2048
      %v2050 = vsel %vm1333, %v2012, 0.0
      %v2051 = vadd.f32 %v2049, %v2050
      %v2052 = vsel %vm1333, %v2013, 0.0
      %v2053 = vadd.f32 %v2051, %v2052
      %v2054 = vsel %vm1333, %v2014, 0.0
      %v2055 = vadd.f32 %v2053, %v2054
      %v2056 = vsel %vm1333, %v2015, 0.0
      %v2057 = vadd.f32 %v2055, %v2056
      %v2058 = vsel %vm1333, %v2016, 0.0
      %v2059 = vadd.f32 %v2057, %v2058
      %v2060 = vsel %vm1333, %v2017, 0.0
      %v2061 = vadd.f32 %v2059, %v2060
      %v2062 = vsel %vm1333, %v2018, 0.0
      %v2063 = vadd.f32 %v2061, %v2062
      %v2064 = vsel %vm1333, %v2019, 0.0
      %v2065 = vadd.f32 %v2063, %v2064
      %v2066 = vsel %vm1333, %v2020, 0.0
      %v2067 = vadd.f32 %v2065, %v2066
      %v2068 = vsel %vm1333, %v2021, 0.0
      %v2069 = vadd.f32 %v2067, %v2068
      %v2070 = vsel %vm1333, %v2022, 0.0
      %v2071 = vadd.f32 %v2069, %v2070
      %v2072 = vsel %vm1333, %v2023, 0.0
      %v2073 = vadd.f32 %v2071, %v2072
      %v2074 = vsel %vm1333, %v2024, 0.0
      %v2075 = vadd.f32 %v2073, %v2074
      %v2076 = vsel %vm1333, %v2025, 0.0
      %v2077 = vadd.f32 %v2075, %v2076
      %v2078 = vsel %vm1333, %v2026, 0.0
      %v2079 = vadd.f32 %v2077, %v2078
      %v2080 = vsel %vm1333, %v2027, 0.0
      %v2081 = vadd.f32 %v2079, %v2080
      %v2082 = vsel %vm1333, %v2028, 0.0
      %v2083 = vadd.f32 %v2081, %v2082
      %v2084 = vsel %vm1333, %v2029, 0.0
      %v2085 = vadd.f32 %v2083, %v2084
      %v2086 = vsel %vm1333, %v2030, 0.0
      %v2087 = vadd.f32 %v2085, %v2086
      %v2088 = vsel %vm1333, %v2031, 0.0
      %v2089 = vadd.f32 %v2087, %v2088
      %v2090 = vsel %vm1333, %v2032, 0.0
      %v2091 = vadd.f32 %v2089, %v2090
      %v2092 = vsel %vm1333, %v2033, 0.0
      %v2093 = vadd.f32 %v2091, %v2092
      %v2094 = vsel %vm1333, %v2034, 0.0
      %v2095 = vadd.f32 %v2093, %v2094
      %v2096 = vsel %vm1333, %v2035, 0.0
      %v2097 = vadd.f32 %v2095, %v2096
      %v2098 = vsel %vm1333, %v2036, 0.0
      %v2099 = vadd.f32 %v2097, %v2098
      %v2100 = vrot.slane %v2099, 4
      %v2101 = vadd.f32 %v2099, %v2100
      %v2102 = vrot.slane %v2101, 2
      %v2103 = vadd.f32 %v2101, %v2102
      %v2104 = vrot.slane %v2103, 1
      %v2105 = vadd.f32 %v2103, %v2104
      %2106 = vst.msk [vmem:[%s241] sm:$0x1] %vm2003, %v2105
      %p2107 = scmp.lt.s32.totalorder %s17, 1
      %s2108 = scalar_select %p2107, %s17, 1
      %s2109 = smul.addr %s2108, 32
      %s2110 = smul.addr %s2109, 8
      %s2111 = scalar_lea.vmem %s3, %s2110
      %p2112 = scmp.lt.s32.totalorder %s17, 1
      %s2113 = scalar_select %p2112, %s17, 1
      %s2114 = scalar_lea.vmem %s4, %s2113
      %p2115 = scmp.lt.s32.totalorder %s17, 1
      %s2116 = scalar_select %p2115, %s17, 1
      %s2117 = scalar_lea.vmem %s5, %s2116
      // Predicated region
      $region33: #{cnn_block_forward.2} parent=31 // pred_check
        %p2118 = pneg %p103
      $region34: #{cnn_block_forward.2} parent=31 // pred_check_branch
        %2120 = sbr.rel (%p2118) target = $region36
      $region35: #{cnn_block_forward.2} parent=31 // pred_region
        _
      $region36: #{cnn_block_forward.2} parent=31 // pred_fallthru
        _
      // Predicated region
      $region37: #{cnn_block_forward.2} parent=31 // pred_check
        %p2121 = pneg %p129
      $region38: #{cnn_block_forward.2} parent=31 // pred_check_branch
        %2123 = sbr.rel (%p2121) target = $region40
      $region39: #{cnn_block_forward.2} parent=31 // pred_region
        _
      $region40: #{cnn_block_forward.2} parent=31 // pred_fallthru
        _
      // Predicated region
      $region41: #{cnn_block_forward.2} parent=31 // pred_check
        %p2124 = pneg %p155
      $region42: #{cnn_block_forward.2} parent=31 // pred_check_branch
        %2126 = sbr.rel (%p2124) target = $region44
      $region43: #{cnn_block_forward.2} parent=31 // pred_region
        _
      $region44: #{cnn_block_forward.2} parent=31 // pred_fallthru
        _
    $region32: #{cnn_block_forward.2} parent=5 // pred_fallthru
      _
    %p2127 = scmp.le.s32.totalorder 2, %s12
    // Predicated region
    $region45: #{cnn_block_forward.2} parent=5 // pred_check
      %p2128 = pneg %p2127
    $region46: #{cnn_block_forward.2} parent=5 // pred_check_branch
      %2130 = sbr.rel (%p2128) target = $region48
    $region47: #{cnn_block_forward.2} parent=5 // pred_region
      %s2131 = ssub.s32 %s12, 2
      // Predicated region
      $region49: #{cnn_block_forward.2} parent=47 // pred_check
        %p2132 = pneg %p109
      $region50: #{cnn_block_forward.2} parent=47 // pred_check_branch
        %2134 = sbr.rel (%p2132) target = $region52
      $region51: #{cnn_block_forward.2} parent=47 // pred_region
        %p2135 = scmp.lt.s32.totalorder %s18, 1
        %s2136 = scalar_select %p2135, %s18, 1
        %s2137 = smul.addr %s2136, 32
        %s2138 = smul.addr %s2137, 8
        %s2139 = scalar_lea.vmem %s3, %s2138
      $region52: #{cnn_block_forward.2} parent=47 // pred_fallthru
        _
      // Predicated region
      $region53: #{cnn_block_forward.2} parent=47 // pred_check
        %p2140 = pneg %p135
      $region54: #{cnn_block_forward.2} parent=47 // pred_check_branch
        %2142 = sbr.rel (%p2140) target = $region56
      $region55: #{cnn_block_forward.2} parent=47 // pred_region
        %p2143 = scmp.lt.s32.totalorder %s18, 1
        %s2144 = scalar_select %p2143, %s18, 1
        %s2145 = scalar_lea.vmem %s4, %s2144
      $region56: #{cnn_block_forward.2} parent=47 // pred_fallthru
        _
      // Predicated region
      $region57: #{cnn_block_forward.2} parent=47 // pred_check
        %p2146 = pneg %p161
      $region58: #{cnn_block_forward.2} parent=47 // pred_check_branch
        %2148 = sbr.rel (%p2146) target = $region60
      $region59: #{cnn_block_forward.2} parent=47 // pred_region
        %p2149 = scmp.lt.s32.totalorder %s18, 1
        %s2150 = scalar_select %p2149, %s18, 1
        %s2151 = scalar_lea.vmem %s5, %s2150
      $region60: #{cnn_block_forward.2} parent=47 // pred_fallthru
        _
    $region48: #{cnn_block_forward.2} parent=5 // pred_fallthru
      _
  $region6: #{cnn_block_forward.2} parent=0 // loop_footer
    %s16 = sadd.s32 1, %s12
  $region7: #{cnn_block_forward.2} parent=0 // loop_footer_branch
    %11 = sbr.rel target = $region3
  $region8: #{cnn_block_forward.2} parent=0 // loop_exit
    _

</llo_original>
